<compile_context>
chip_gen: v7x
topology: tpu7x:2x2x1
jax: 0.10.0
libtpu: 0.0.40
codegen_flags: <defaults>
</compile_context>

<pallas_src>
import jax
import jax.numpy as jnp
from jax.experimental import pallas as pl
from jax.experimental.pallas import tpu as pltpu

LANES = 128


def _round_up(v, m):
    return -(-v // m) * m


# ---------------------------------------------------------------------------
# Kernel 1: fused conv(5x5, valid) + bias + tanh + avgpool(2x2)
#   Single matmul: shared space-to-depth patches  x  4 phase weight blocks.
# ---------------------------------------------------------------------------
def _conv_tanh_pool_kernel(c_ref, w_ref, o_ref):
    # c_ref: (bm, Kp)      bf16 shared patches (9 s2d taps + ones column)
    # w_ref: (Kp, 4*128)   bf16 phase weights, bias folded into the ones row
    # o_ref: (bm, 128)     pooled tanh output (lane-dense)
    h = jnp.dot(c_ref[...], w_ref[...], preferred_element_type=jnp.float32)
    h = jnp.tanh(h)                                   # tanh(conv + b), 4 phases
    acc = h[:, 0:128] + h[:, 128:256] + h[:, 256:384] + h[:, 384:512]
    o_ref[...] = (0.25 * acc).astype(o_ref.dtype)     # 2x2 average pool


def _pool_phase_weights(w, b, kp):
    """(OC,IC,5,5) conv weight + bias -> (kp, 4*128) phase-blocked matmul weight.

    Row order matches the space-to-depth patch order (di, dj, u, v, c), plus a
    bias row at index 36*IC (paired with the ones column of the patches).
    Phase (r, s) occupies lane block 128*(2r+s).
    """
    oc, ic, k, _ = w.shape
    wt = jnp.transpose(w, (2, 3, 1, 0)).astype(jnp.float32)       # (ki,kj,c,oc)
    blocks = []
    for r in (0, 1):
        for s in (0, 1):
            wr = jnp.pad(wt, ((r, 1 - r), (s, 1 - s), (0, 0), (0, 0)))  # (6,6,..)
            wr = wr.reshape(3, 2, 3, 2, ic, oc).transpose(0, 2, 1, 3, 4, 5)
            wr = wr.reshape(36 * ic, oc)                          # (di,dj,u,v,c)
            wr = jnp.concatenate([wr, b.reshape(1, oc).astype(jnp.float32)], 0)
            wr = jnp.pad(wr, ((0, kp - 36 * ic - 1), (0, LANES - oc)))
            blocks.append(wr)
    return jnp.concatenate(blocks, axis=1)                        # (kp, 512)


def conv5_tanh_pool2(x, w, b, *, block_m=1024):
    """avgpool2(tanh(conv_valid(x, w) + b)).  x NHWC (B,H,W,C), w (OC,IC,5,5)."""
    B, H, W, C = x.shape
    OC, IC, K, _ = w.shape
    assert IC == C and K == 5 and H % 2 == 0 and W % 2 == 0 and OC <= LANES
    PH, PW = (H - K + 1) // 2, (W - K + 1) // 2
    Mp = B * PH * PW
    Kdim = 36 * C                        # 9 s2d taps x (2x2 sub-pos) x channels
    Kp = _round_up(Kdim + 1, 16)         # +1 = ones column (folded bias)

    # ---- space-to-depth + 9 contiguous taps (XLA, bf16 stream) ----
    xb = x.astype(jnp.bfloat16)
    H2, W2 = H // 2, W // 2
    xs = (xb.reshape(B, H2, 2, W2, 2, C)
            .transpose(0, 1, 3, 2, 4, 5)
            .reshape(B, H2, W2, 4 * C))
    taps = [xs[:, di:di + PH, dj:dj + PW, :]
            for di in range(3) for dj in range(3)]
    cols = jnp.stack(taps, axis=3).reshape(Mp, Kdim)
    cols = jnp.concatenate([cols, jnp.ones((Mp, 1), cols.dtype)], axis=1)

    # ---- block sizing: bf16-friendly, >=2 blocks so v7x's 2nd core has work ----
    bm = min(_round_up(block_m, 16), _round_up(-(-Mp // 2), 16))
    Mpad = _round_up(Mp, bm)
    cols = jnp.pad(cols, ((0, Mpad - Mp), (0, Kp - Kdim - 1)))

    w_all = _pool_phase_weights(w, b, Kp).astype(jnp.bfloat16)    # (Kp, 512)

    out = pl.pallas_call(
        _conv_tanh_pool_kernel,
        out_shape=jax.ShapeDtypeStruct((Mpad, LANES), jnp.bfloat16),
        grid=(Mpad // bm,),
        in_specs=[
            pl.BlockSpec((bm, Kp), lambda i: (i, 0)),
            pl.BlockSpec((Kp, 4 * LANES), lambda i: (0, 0)),
        ],
        out_specs=pl.BlockSpec((bm, LANES), lambda i: (i, 0)),
        compiler_params=pltpu.CompilerParams(
            dimension_semantics=("parallel",)),
    )(cols, w_all)

    return out[:Mp, :OC].reshape(B, PH, PW, OC)       # bf16, NHWC


# ---------------------------------------------------------------------------
# Kernel 2: fused classifier tail
#   conv3 (5x5, 16->120 as matmul, bias folded) + tanh + fc1 + tanh + fc2.
# ---------------------------------------------------------------------------
def _classifier_kernel(x_ref, w3_ref, w4_ref, b4_ref, w5_ref, b5_ref, o_ref):
    h = jnp.tanh(jnp.dot(x_ref[...], w3_ref[...],
                         preferred_element_type=jnp.float32))
    h = jnp.tanh(jnp.dot(h.astype(w4_ref.dtype), w4_ref[...],
                         preferred_element_type=jnp.float32) + b4_ref[...])
    o_ref[...] = (jnp.dot(h.astype(w5_ref.dtype), w5_ref[...],
                          preferred_element_type=jnp.float32)
                  + b5_ref[...]).astype(o_ref.dtype)


def classifier_head(x, w3, b3, w4, b4, w5, b5, *, block_b=512):
    """x: (B, 5, 5, 16) NHWC -> logits (B, n_classes)."""
    B = x.shape[0]
    Kdim = x.shape[1] * x.shape[2] * x.shape[3]       # 400
    OC3, NC = w3.shape[0], w5.shape[0]
    Kp = _round_up(Kdim + 1, 16)                      # +1 ones column for b3

    xf = x.reshape(B, Kdim).astype(jnp.bfloat16)
    xf = jnp.concatenate([xf, jnp.ones((B, 1), xf.dtype)], axis=1)
    bb = min(_round_up(block_b, 16), _round_up(B, 16))
    Bp = _round_up(B, bb)
    xf = jnp.pad(xf, ((0, Bp - B), (0, Kp - Kdim - 1)))

    # conv3 as matmul; flatten order (h, w, c) matches x.reshape above and
    # PyTorch's x.view(-1, 120) channel order.
    w3m = jnp.transpose(w3, (2, 3, 1, 0)).reshape(Kdim, OC3)
    w3m = jnp.concatenate([w3m, b3.reshape(1, OC3)], axis=0)      # folded bias
    w3p = jnp.pad(w3m, ((0, Kp - Kdim - 1), (0, LANES - OC3))).astype(jnp.bfloat16)
    w4p = jnp.pad(w4.T, ((0, LANES - w4.shape[1]),
                         (0, LANES - w4.shape[0]))).astype(jnp.bfloat16)
    b4p = jnp.pad(b4.reshape(1, -1), ((0, 0), (0, LANES - b4.shape[0]))).astype(jnp.float32)
    w5p = jnp.pad(w5.T, ((0, LANES - w5.shape[1]),
                         (0, LANES - w5.shape[0]))).astype(jnp.bfloat16)
    b5p = jnp.pad(b5.reshape(1, -1), ((0, 0), (0, LANES - b5.shape[0]))).astype(jnp.float32)

    out = pl.pallas_call(
        _classifier_kernel,
        out_shape=jax.ShapeDtypeStruct((Bp, LANES), jnp.float32),
        grid=(Bp // bb,),
        in_specs=[
            pl.BlockSpec((bb, Kp), lambda i: (i, 0)),
            pl.BlockSpec((Kp, LANES), lambda i: (0, 0)),
            pl.BlockSpec((LANES, LANES), lambda i: (0, 0)),
            pl.BlockSpec((1, LANES), lambda i: (0, 0)),
            pl.BlockSpec((LANES, LANES), lambda i: (0, 0)),
            pl.BlockSpec((1, LANES), lambda i: (0, 0)),
        ],
        out_specs=pl.BlockSpec((bb, LANES), lambda i: (i, 0)),
        compiler_params=pltpu.CompilerParams(
            dimension_semantics=("parallel",)),
    )(xf, w3p, w4p, b4p, w5p, b5p)
    return out[:B, :NC]


# ---------------------------------------------------------------------------
# Parameters (deterministic, PyTorch-default-style uniform init)
# ---------------------------------------------------------------------------
def init_params(key, channels, n_classes):
    keys = jax.random.split(key, 10)

    def unif(k, shape, fan_in):
        bound = 1.0 / jnp.sqrt(fan_in)
        return jax.random.uniform(k, shape, jnp.float32, -bound, bound)

    return {
        "w1": unif(keys[0], (6, channels, 5, 5), channels * 25),
        "b1": unif(keys[1], (6,), channels * 25),
        "w2": unif(keys[2], (16, 6, 5, 5), 6 * 25),
        "b2": unif(keys[3], (16,), 6 * 25),
        "w3": unif(keys[4], (120, 16, 5, 5), 16 * 25),
        "b3": unif(keys[5], (120,), 16 * 25),
        "w4": unif(keys[6], (84, 120), 120),
        "b4": unif(keys[7], (84,), 120),
        "w5": unif(keys[8], (n_classes, 84), 84),
        "b5": unif(keys[9], (n_classes,), 84),
    }


# ---------------------------------------------------------------------------
# Full forward pass (mirrors LeNet_5.forward)
# ---------------------------------------------------------------------------
def lenet5_forward(p, x):
    # x: (B, C, 32, 32) NCHW like PyTorch; convert once to NHWC.
    x = jnp.transpose(x, (0, 2, 3, 1))
    x = conv5_tanh_pool2(x, p["w1"], p["b1"])     # (B, 14, 14,  6) bf16
    x = conv5_tanh_pool2(x, p["w2"], p["b2"])     # (B,  5,  5, 16) bf16
    return classifier_head(x, p["w3"], p["b3"], p["w4"], p["b4"],
                           p["w5"], p["b5"])      # (B, n_classes) f32


if __name__ == "__main__":
    channels, n_classes, batch = 1, 10, 2
    key = jax.random.PRNGKey(0)
    k_param, k_x = jax.random.split(key)
    params = init_params(k_param, channels, n_classes)

    # LeNet-5 needs 32x32 spatial input so the final conv yields 1x1 and
    # x.view(-1, 120) is exact.
    x = jax.random.normal(k_x, (batch, channels, 32, 32), jnp.float32)

    out = jax.jit(lenet5_forward)(params, x)
    out = jax.block_until_ready(out)
    assert out.shape == (batch, n_classes)
    assert out.dtype == jnp.float32
    print("KERNEL_OK")
</pallas_src>

<mosaic_0001>
module attributes {stable_mosaic.version = 11 : i64} {
  func.func @_conv_tanh_pool_kernel(%arg0: i32, %arg1: memref<208x48xbf16, #tpu.memory_space<vmem>>, %arg2: memref<48x512xbf16, #tpu.memory_space<vmem>>, %arg3: memref<208x128xbf16, #tpu.memory_space<vmem>>) attributes {dimension_semantics = [#tpu.dimension_semantics<parallel>], iteration_bounds = array<i64: 2>, scalar_prefetch = 0 : i64, scratch_operands = 0 : i64, tpu.core_type = #tpu.core_type<tc>, window_params = [{transform_indices = @transform_0, window_bounds = array<i64: 208, 48>}, {pipeline_mode = #tpu.pipeline_mode<synchronous>, transform_indices = @transform_1, window_bounds = array<i64: 48, 512>}, {transform_indices = @transform_2, window_bounds = array<i64: 208, 128>}]} {
    %c0 = arith.constant 0 : index
    %c0_0 = arith.constant 0 : index
    %0 = vector.load %arg1[%c0, %c0_0] : memref<208x48xbf16, #tpu.memory_space<vmem>>, vector<208x48xbf16>
    %c0_1 = arith.constant 0 : index
    %c0_2 = arith.constant 0 : index
    %1 = vector.load %arg2[%c0_1, %c0_2] : memref<48x512xbf16, #tpu.memory_space<vmem>>, vector<48x512xbf16>
    %cst = arith.constant dense<0.000000e+00> : vector<208x512xf32>
    %2 = tpu.matmul %0, %1, %cst {dimension_numbers = #tpu.dot_dimension_numbers<[1], [0], [0], [1], [0, 0, 1, 1], [], []>} : vector<208x48xbf16>, vector<48x512xbf16>, vector<208x512xf32> -> vector<208x512xf32>
    %3 = math.tanh %2 : vector<208x512xf32>
    %4 = vector.extract_strided_slice %3 {offsets = [0, 0], sizes = [208, 128], strides = [1, 1]} : vector<208x512xf32> to vector<208x128xf32>
    %5 = vector.extract_strided_slice %3 {offsets = [0, 128], sizes = [208, 128], strides = [1, 1]} : vector<208x512xf32> to vector<208x128xf32>
    %6 = arith.addf %4, %5 : vector<208x128xf32>
    %7 = vector.extract_strided_slice %3 {offsets = [0, 256], sizes = [208, 128], strides = [1, 1]} : vector<208x512xf32> to vector<208x128xf32>
    %8 = arith.addf %6, %7 : vector<208x128xf32>
    %9 = vector.extract_strided_slice %3 {offsets = [0, 384], sizes = [208, 128], strides = [1, 1]} : vector<208x512xf32> to vector<208x128xf32>
    %10 = arith.addf %8, %9 : vector<208x128xf32>
    %cst_3 = arith.constant 2.500000e-01 : f32
    %11 = vector.broadcast %cst_3 : f32 to vector<208x128xf32>
    %12 = arith.mulf %11, %10 : vector<208x128xf32>
    %13 = arith.truncf %12 : vector<208x128xf32> to vector<208x128xbf16>
    %c0_4 = arith.constant 0 : index
    %c0_5 = arith.constant 0 : index
    %14 = vector.load %arg3[%c0_4, %c0_5] : memref<208x128xbf16, #tpu.memory_space<vmem>>, vector<208x128xbf16>
    tpu.vector_store %arg3[%c0_4, %c0_5], %13 {strides = array<i32>} : memref<208x128xbf16, #tpu.memory_space<vmem>>, vector<208x128xbf16>,
    return
  }
  func.func @transform_0(%arg0: i32) -> (i32, i32) {
    %c0_i32 = arith.constant 0 : i32
    %c0_i32_0 = arith.constant 0 : i32
    return %arg0, %c0_i32 : i32, i32
  }
  func.func @transform_1(%arg0: i32) -> (i32, i32) {
    %c0_i32 = arith.constant 0 : i32
    %c0_i32_0 = arith.constant 0 : i32
    %c0_i32_1 = arith.constant 0 : i32
    return %c0_i32, %c0_i32_0 : i32, i32
  }
  func.func @transform_2(%arg0: i32) -> (i32, i32) {
    %c0_i32 = arith.constant 0 : i32
    %c0_i32_0 = arith.constant 0 : i32
    return %arg0, %c0_i32 : i32, i32
  }
}

module attributes {stable_mosaic.version = 11 : i64} {
  func.func @_conv_tanh_pool_kernel(%arg0: i32, %arg1: memref<32x224xbf16, #tpu.memory_space<vmem>>, %arg2: memref<224x512xbf16, #tpu.memory_space<vmem>>, %arg3: memref<32x128xbf16, #tpu.memory_space<vmem>>) attributes {dimension_semantics = [#tpu.dimension_semantics<parallel>], iteration_bounds = array<i64: 2>, scalar_prefetch = 0 : i64, scratch_operands = 0 : i64, tpu.core_type = #tpu.core_type<tc>, window_params = [{transform_indices = @transform_0, window_bounds = array<i64: 32, 224>}, {pipeline_mode = #tpu.pipeline_mode<synchronous>, transform_indices = @transform_1, window_bounds = array<i64: 224, 512>}, {transform_indices = @transform_2, window_bounds = array<i64: 32, 128>}]} {
    %c0 = arith.constant 0 : index
    %c0_0 = arith.constant 0 : index
    %0 = vector.load %arg1[%c0, %c0_0] : memref<32x224xbf16, #tpu.memory_space<vmem>>, vector<32x224xbf16>
    %c0_1 = arith.constant 0 : index
    %c0_2 = arith.constant 0 : index
    %1 = vector.load %arg2[%c0_1, %c0_2] : memref<224x512xbf16, #tpu.memory_space<vmem>>, vector<224x512xbf16>
    %cst = arith.constant dense<0.000000e+00> : vector<32x512xf32>
    %2 = tpu.matmul %0, %1, %cst {dimension_numbers = #tpu.dot_dimension_numbers<[1], [0], [0], [1], [0, 0, 1, 1], [], []>} : vector<32x224xbf16>, vector<224x512xbf16>, vector<32x512xf32> -> vector<32x512xf32>
    %3 = math.tanh %2 : vector<32x512xf32>
    %4 = vector.extract_strided_slice %3 {offsets = [0, 0], sizes = [32, 128], strides = [1, 1]} : vector<32x512xf32> to vector<32x128xf32>
    %5 = vector.extract_strided_slice %3 {offsets = [0, 128], sizes = [32, 128], strides = [1, 1]} : vector<32x512xf32> to vector<32x128xf32>
    %6 = arith.addf %4, %5 : vector<32x128xf32>
    %7 = vector.extract_strided_slice %3 {offsets = [0, 256], sizes = [32, 128], strides = [1, 1]} : vector<32x512xf32> to vector<32x128xf32>
    %8 = arith.addf %6, %7 : vector<32x128xf32>
    %9 = vector.extract_strided_slice %3 {offsets = [0, 384], sizes = [32, 128], strides = [1, 1]} : vector<32x512xf32> to vector<32x128xf32>
    %10 = arith.addf %8, %9 : vector<32x128xf32>
    %cst_3 = arith.constant 2.500000e-01 : f32
    %11 = vector.broadcast %cst_3 : f32 to vector<32x128xf32>
    %12 = arith.mulf %11, %10 : vector<32x128xf32>
    %13 = arith.truncf %12 : vector<32x128xf32> to vector<32x128xbf16>
    %c0_4 = arith.constant 0 : index
    %c0_5 = arith.constant 0 : index
    %14 = vector.load %arg3[%c0_4, %c0_5] : memref<32x128xbf16, #tpu.memory_space<vmem>>, vector<32x128xbf16>
    tpu.vector_store %arg3[%c0_4, %c0_5], %13 {strides = array<i32>} : memref<32x128xbf16, #tpu.memory_space<vmem>>, vector<32x128xbf16>,
    return
  }
  func.func @transform_0(%arg0: i32) -> (i32, i32) {
    %c0_i32 = arith.constant 0 : i32
    %c0_i32_0 = arith.constant 0 : i32
    return %arg0, %c0_i32 : i32, i32
  }
  func.func @transform_1(%arg0: i32) -> (i32, i32) {
    %c0_i32 = arith.constant 0 : i32
    %c0_i32_0 = arith.constant 0 : i32
    %c0_i32_1 = arith.constant 0 : i32
    return %c0_i32, %c0_i32_0 : i32, i32
  }
  func.func @transform_2(%arg0: i32) -> (i32, i32) {
    %c0_i32 = arith.constant 0 : i32
    %c0_i32_0 = arith.constant 0 : i32
    return %arg0, %c0_i32 : i32, i32
  }
}

module attributes {stable_mosaic.version = 11 : i64} {
  func.func @_classifier_kernel(%arg0: i32, %arg1: memref<16x416xbf16, #tpu.memory_space<vmem>>, %arg2: memref<416x128xbf16, #tpu.memory_space<vmem>>, %arg3: memref<128x128xbf16, #tpu.memory_space<vmem>>, %arg4: memref<1x128xf32, #tpu.memory_space<vmem>>, %arg5: memref<128x128xbf16, #tpu.memory_space<vmem>>, %arg6: memref<1x128xf32, #tpu.memory_space<vmem>>, %arg7: memref<16x128xf32, #tpu.memory_space<vmem>>) attributes {dimension_semantics = [#tpu.dimension_semantics<parallel>], iteration_bounds = array<i64: 1>, scalar_prefetch = 0 : i64, scratch_operands = 0 : i64, tpu.core_type = #tpu.core_type<tc>, window_params = [{transform_indices = @transform_0, window_bounds = array<i64: 16, 416>}, {pipeline_mode = #tpu.pipeline_mode<synchronous>, transform_indices = @transform_1, window_bounds = array<i64: 416, 128>}, {pipeline_mode = #tpu.pipeline_mode<synchronous>, transform_indices = @transform_2, window_bounds = array<i64: 128, 128>}, {pipeline_mode = #tpu.pipeline_mode<synchronous>, transform_indices = @transform_3, window_bounds = array<i64: 1, 128>}, {pipeline_mode = #tpu.pipeline_mode<synchronous>, transform_indices = @transform_4, window_bounds = array<i64: 128, 128>}, {pipeline_mode = #tpu.pipeline_mode<synchronous>, transform_indices = @transform_5, window_bounds = array<i64: 1, 128>}, {transform_indices = @transform_6, window_bounds = array<i64: 16, 128>}]} {
    %c0 = arith.constant 0 : index
    %c0_0 = arith.constant 0 : index
    %0 = vector.load %arg1[%c0, %c0_0] : memref<16x416xbf16, #tpu.memory_space<vmem>>, vector<16x416xbf16>
    %c0_1 = arith.constant 0 : index
    %c0_2 = arith.constant 0 : index
    %1 = vector.load %arg2[%c0_1, %c0_2] : memref<416x128xbf16, #tpu.memory_space<vmem>>, vector<416x128xbf16>
    %cst = arith.constant dense<0.000000e+00> : vector<16x128xf32>
    %2 = tpu.matmul %0, %1, %cst {dimension_numbers = #tpu.dot_dimension_numbers<[1], [0], [0], [1], [0, 0, 1, 1], [], []>} : vector<16x416xbf16>, vector<416x128xbf16>, vector<16x128xf32> -> vector<16x128xf32>
    %3 = math.tanh %2 : vector<16x128xf32>
    %4 = arith.truncf %3 : vector<16x128xf32> to vector<16x128xbf16>
    %c0_3 = arith.constant 0 : index
    %c0_4 = arith.constant 0 : index
    %5 = vector.load %arg3[%c0_3, %c0_4] : memref<128x128xbf16, #tpu.memory_space<vmem>>, vector<128x128xbf16>
    %cst_5 = arith.constant dense<0.000000e+00> : vector<16x128xf32>
    %6 = tpu.matmul %4, %5, %cst_5 {dimension_numbers = #tpu.dot_dimension_numbers<[1], [0], [0], [1], [0, 0, 1, 1], [], []>} : vector<16x128xbf16>, vector<128x128xbf16>, vector<16x128xf32> -> vector<16x128xf32>
    %c0_6 = arith.constant 0 : index
    %c0_7 = arith.constant 0 : index
    %7 = vector.load %arg4[%c0_6, %c0_7] : memref<1x128xf32, #tpu.memory_space<vmem>>, vector<1x128xf32>
    %8 = vector.broadcast %7 : vector<1x128xf32> to vector<16x128xf32>
    %9 = arith.addf %6, %8 : vector<16x128xf32>
    %10 = math.tanh %9 : vector<16x128xf32>
    %11 = arith.truncf %10 : vector<16x128xf32> to vector<16x128xbf16>
    %c0_8 = arith.constant 0 : index
    %c0_9 = arith.constant 0 : index
    %12 = vector.load %arg5[%c0_8, %c0_9] : memref<128x128xbf16, #tpu.memory_space<vmem>>, vector<128x128xbf16>
    %cst_10 = arith.constant dense<0.000000e+00> : vector<16x128xf32>
    %13 = tpu.matmul %11, %12, %cst_10 {dimension_numbers = #tpu.dot_dimension_numbers<[1], [0], [0], [1], [0, 0, 1, 1], [], []>} : vector<16x128xbf16>, vector<128x128xbf16>, vector<16x128xf32> -> vector<16x128xf32>
    %c0_11 = arith.constant 0 : index
    %c0_12 = arith.constant 0 : index
    %14 = vector.load %arg6[%c0_11, %c0_12] : memref<1x128xf32, #tpu.memory_space<vmem>>, vector<1x128xf32>
    %15 = vector.broadcast %14 : vector<1x128xf32> to vector<16x128xf32>
    %16 = arith.addf %13, %15 : vector<16x128xf32>
    %c0_13 = arith.constant 0 : index
    %c0_14 = arith.constant 0 : index
    %17 = vector.load %arg7[%c0_13, %c0_14] : memref<16x128xf32, #tpu.memory_space<vmem>>, vector<16x128xf32>
    tpu.vector_store %arg7[%c0_13, %c0_14], %16 {strides = array<i32>} : memref<16x128xf32, #tpu.memory_space<vmem>>, vector<16x128xf32>,
    return
  }
  func.func @transform_0(%arg0: i32) -> (i32, i32) {
    %c0_i32 = arith.constant 0 : i32
    %c0_i32_0 = arith.constant 0 : i32
    return %arg0, %c0_i32 : i32, i32
  }
  func.func @transform_1(%arg0: i32) -> (i32, i32) {
    %c0_i32 = arith.constant 0 : i32
    %c0_i32_0 = arith.constant 0 : i32
    %c0_i32_1 = arith.constant 0 : i32
    return %c0_i32, %c0_i32_0 : i32, i32
  }
  func.func @transform_2(%arg0: i32) -> (i32, i32) {
    %c0_i32 = arith.constant 0 : i32
    %c0_i32_0 = arith.constant 0 : i32
    %c0_i32_1 = arith.constant 0 : i32
    return %c0_i32, %c0_i32_0 : i32, i32
  }
  func.func @transform_3(%arg0: i32) -> (i32, i32) {
    %c0_i32 = arith.constant 0 : i32
    %c0_i32_0 = arith.constant 0 : i32
    %c0_i32_1 = arith.constant 0 : i32
    return %c0_i32, %c0_i32_0 : i32, i32
  }
  func.func @transform_4(%arg0: i32) -> (i32, i32) {
    %c0_i32 = arith.constant 0 : i32
    %c0_i32_0 = arith.constant 0 : i32
    %c0_i32_1 = arith.constant 0 : i32
    return %c0_i32, %c0_i32_0 : i32, i32
  }
  func.func @transform_5(%arg0: i32) -> (i32, i32) {
    %c0_i32 = arith.constant 0 : i32
    %c0_i32_0 = arith.constant 0 : i32
    %c0_i32_1 = arith.constant 0 : i32
    return %c0_i32, %c0_i32_0 : i32, i32
  }
  func.func @transform_6(%arg0: i32) -> (i32, i32) {
    %c0_i32 = arith.constant 0 : i32
    %c0_i32_0 = arith.constant 0 : i32
    return %arg0, %c0_i32 : i32, i32
  }
}

</mosaic_0001>

<llo_original>
// kernel: lenet5_forward.3
$region0: #{lenet5_forward.3}
  #allocation0 [shape = 'u32[]', space=smem, size = 0x4, offset = 0x4, fixed_abs, tag = 'smem constant byte address 0x4 - core index']
  #allocation1 [shape = 'u32[144,128]{1,0:T(1,128)}', space=vmem, size = 0x12000, scoped, tag = 'internal scratch']
  %s0 = inlined_call_operand.vmem [shape: bf16[416,48], index: 0, kind: input, shape index: {}]
  %s1 = inlined_call_operand.vmem [shape: bf16[48,512], index: 1, kind: input, shape index: {}]
  %s2 = inlined_call_operand.vmem [shape: bf16[416,128], index: 2, kind: output, shape index: {}]
  %s3 = sld [smem:[#allocation0]]
  $region41: #{lenet5_forward.3} parent=0
    _
  %s5 = ssub.s32 1, %s3
  %s6 = scalar_select 0, %s5, %s3
  loop: start=0, step=1, limit=4
  $region2: #{lenet5_forward.3} parent=0 // loop_pre_header
    _
  $region3: #{lenet5_forward.3} parent=0 // loop_header
    %s8 = sphi 0, %s12
    %p9 = scmp.ge.s32.totalorder %s8, 4
    %s18 = sphi 0, %s20
    %s21 = sphi 0, %s18
    %s22 = sphi 0, %s21
    %s38 = sphi 0, %s22
    %s42 = sphi 0, %s42
    %s44 = sphi 0, %s42
    %s45 = sphi 0, %s44
    %s59 = sphi 0, %s45
    %s65 = sphi 0, %s67
    %s68 = sphi 0, %s65
    %s69 = sphi 0, %s68
    %s85 = sphi 0, %s69
  $region4: #{lenet5_forward.3} parent=0 // loop_header_branch
    %11 = sbr.rel (%p9) target = $region8
  $region5: #{lenet5_forward.3} parent=0 // loop_body
    %s13 = ssub.s32 %s8, 1
    %s14 = ssub.s32 %s8, 2
    %s15 = sadd.s32 %s8, 1
    %s16 = ssub.s32 %s8, %s15
    %p17 = scmp.eq.s32.totalorder %s16, 0
    %s19 = sadd.s32 %s18, 1
    %s20 = scalar_select %p17, %s18, %s19
    %p23 = pneg %p17
    %p24 = scmp.eq.s32.totalorder %s8, 1
    %p25 = por %p23, %p24
    %p26 = scmp.ne.s32.totalorder %s18, %s21
    %p27 = scmp.eq.s32.totalorder %s8, 0
    %p28 = por %p26, %p27
    %p29 = scmp.ne.s32.totalorder %s18, %s21
    %p30 = scmp.eq.s32.totalorder %s13, 1
    %p31 = por %p29, %p30
    %p32 = scmp.ne.s32.totalorder %s21, %s22
    %p33 = scmp.eq.s32.totalorder %s13, 0
    %p34 = por %p32, %p33
    %p35 = scmp.ne.s32.totalorder %s21, %s22
    %p36 = scmp.eq.s32.totalorder %s14, 1
    %p37 = por %p35, %p36
    %p39 = scmp.ne.s32.totalorder %s22, %s38
    %p40 = scmp.eq.s32.totalorder %s14, 0
    %p41 = por %p39, %p40
    %s43 = sadd.s32 %s42, 1
    %p46 = scmp.eq.s32.totalorder %s8, 1
    %p47 = scmp.ne.s32.totalorder %s42, %s44
    %p48 = scmp.eq.s32.totalorder %s8, 0
    %p49 = por %p47, %p48
    %p50 = scmp.ne.s32.totalorder %s42, %s44
    %p51 = scmp.eq.s32.totalorder %s13, 1
    %p52 = por %p50, %p51
    %p53 = scmp.ne.s32.totalorder %s44, %s45
    %p54 = scmp.eq.s32.totalorder %s13, 0
    %p55 = por %p53, %p54
    %p56 = scmp.ne.s32.totalorder %s44, %s45
    %p57 = scmp.eq.s32.totalorder %s14, 1
    %p58 = por %p56, %p57
    %p60 = scmp.ne.s32.totalorder %s45, %s59
    %p61 = scmp.eq.s32.totalorder %s14, 0
    %p62 = por %p60, %p61
    %s63 = ssub.s32 %s8, %s15
    %p64 = scmp.eq.s32.totalorder %s63, 0
    %s66 = sadd.s32 %s65, 1
    %s67 = scalar_select %p64, %s65, %s66
    %p70 = pneg %p64
    %p71 = scmp.eq.s32.totalorder %s8, 1
    %p72 = por %p70, %p71
    %p73 = scmp.ne.s32.totalorder %s65, %s68
    %p74 = scmp.eq.s32.totalorder %s8, 0
    %p75 = por %p73, %p74
    %p76 = scmp.ne.s32.totalorder %s65, %s68
    %p77 = scmp.eq.s32.totalorder %s13, 1
    %p78 = por %p76, %p77
    %p79 = scmp.ne.s32.totalorder %s68, %s69
    %p80 = scmp.eq.s32.totalorder %s13, 0
    %p81 = por %p79, %p80
    %p82 = scmp.ne.s32.totalorder %s68, %s69
    %p83 = scmp.eq.s32.totalorder %s14, 1
    %p84 = por %p82, %p83
    %p86 = scmp.ne.s32.totalorder %s69, %s85
    %p87 = scmp.eq.s32.totalorder %s14, 0
    %p88 = por %p86, %p87
    %p89 = scmp.le.s32.totalorder 1, %s8
    %p90 = scmp.lt.s32.totalorder %s8, 3
    %p91 = pnand %p89, %p90
    %p92 = pneg %p91
    // Predicated region
    $region9: #{lenet5_forward.3} parent=5 // pred_check
      _
    $region10: #{lenet5_forward.3} parent=5 // pred_check_branch
      %94 = sbr.rel (%p91) target = $region12
    $region11: #{lenet5_forward.3} parent=5 // pred_region
      %s95 = ssub.s32 %s8, 1
      // Predicated region
      $region13: #{lenet5_forward.3} parent=11 // pred_check
        %p96 = pneg %p55
      $region14: #{lenet5_forward.3} parent=11 // pred_check_branch
        %98 = sbr.rel (%p96) target = $region16
      $region15: #{lenet5_forward.3} parent=11 // pred_region
        _
      $region16: #{lenet5_forward.3} parent=11 // pred_fallthru
        _
    $region12: #{lenet5_forward.3} parent=5 // pred_fallthru
      _
    %p99 = scmp.lt.s32.totalorder %s8, 2
    // Predicated region
    $region17: #{lenet5_forward.3} parent=5 // pred_check
      %p100 = pneg %p99
    $region18: #{lenet5_forward.3} parent=5 // pred_check_branch
      %102 = sbr.rel (%p100) target = $region20
    $region19: #{lenet5_forward.3} parent=5 // pred_region
      // Predicated region
      $region21: #{lenet5_forward.3} parent=19 // pred_check
        %p103 = pneg %p28
      $region22: #{lenet5_forward.3} parent=19 // pred_check_branch
        %105 = sbr.rel (%p103) target = $region24
      $region23: #{lenet5_forward.3} parent=19 // pred_region
        %s106 = smul.u32 26, %s8
        %p107 = scmp.lt.s32.totalorder %s106, 51
        %s108 = scalar_select %p107, %s106, 51
        %s109 = smul.addr %s108, 4
        %s110 = scalar_lea.vmem %s0, %s109
        %s111 = smul.u32 26, %s8
      $region24: #{lenet5_forward.3} parent=19 // pred_fallthru
        _
    $region20: #{lenet5_forward.3} parent=5 // pred_fallthru
      _
    %p112 = scmp.le.s32.totalorder 1, %s8
    %p113 = scmp.lt.s32.totalorder %s8, 3
    %p114 = pnand %p112, %p113
    %p115 = pneg %p114
    // Predicated region
    $region25: #{lenet5_forward.3} parent=5 // pred_check
      _
    $region26: #{lenet5_forward.3} parent=5 // pred_check_branch
      %117 = sbr.rel (%p114) target = $region28
    $region27: #{lenet5_forward.3} parent=5 // pred_region
      %s118 = ssub.s32 %s8, 1
      %s119 = smul.u32 26, %s13
      %p120 = scmp.lt.s32.totalorder %s119, 51
      %s121 = scalar_select %p120, %s119, 51
      %s122 = smul.addr %s121, 4
      %s123 = scalar_lea.vmem %s0, %s122
      %p124 = pneg %p34
      %p125 = pneg %p31
      %p126 = pneg %p55
      %p127 = pneg %p52
      %p128 = pneg %p81
      %p129 = pneg %p78
      %s130 = smul.u32 26, %s13
      %p131 = scmp.lt.s32.totalorder %s130, 51
      %s132 = scalar_select %p131, %s130, 51
      %s133 = smul.addr %s132, 4
      %s134 = scalar_lea.vmem %s2, %s133
      %s135 = smul.u32 26, %s13
      %p136 = scmp.lt.s32.totalorder %s135, 51
      %s137 = scalar_select %p136, %s135, 51
      %s138 = smul.addr %s137, 4
      %s139 = scalar_lea.vmem %s0, %s138
      %s140 = smul.u32 26, %s13
      %s141 = smul.u32 26, %s13
      %p142 = scmp.lt.s32.totalorder %s141, 51
      %s143 = scalar_select %p142, %s141, 51
      %s144 = smul.addr %s143, 4
      %s145 = scalar_lea.vmem %s2, %s144
      %s146 = smul.u32 26, %s13
      %v148 = vld [vmem:[%s139] sm:$0xf]
      %v149 = vld [vmem:[%s139 + $0x4] sm:$0xf]
      %v150 = vld [vmem:[%s139 + $0x8] sm:$0xf]
      %v151 = vld [vmem:[%s139 + $0xc] sm:$0xf]
      %v152 = vld [vmem:[%s139 + $0x10] sm:$0xf]
      %v153 = vld [vmem:[%s139 + $0x14] sm:$0xf]
      %v154 = vld [vmem:[%s139 + $0x18] sm:$0xf]
      %v155 = vld [vmem:[%s139 + $0x1c] sm:$0xf]
      %v156 = vld [vmem:[%s139 + $0x20] sm:$0xf]
      %v157 = vld [vmem:[%s139 + $0x24] sm:$0xf]
      %v158 = vld [vmem:[%s139 + $0x28] sm:$0xf]
      %v159 = vld [vmem:[%s139 + $0x2c] sm:$0xf]
      %v160 = vld [vmem:[%s139 + $0x30] sm:$0xf]
      %v161 = vld [vmem:[%s139 + $0x34] sm:$0xf]
      %v162 = vld [vmem:[%s139 + $0x38] sm:$0xf]
      %v163 = vld [vmem:[%s139 + $0x3c] sm:$0xf]
      %v164 = vld [vmem:[%s139 + $0x40] sm:$0xf]
      %v165 = vld [vmem:[%s139 + $0x44] sm:$0xf]
      %v166 = vld [vmem:[%s139 + $0x48] sm:$0xf]
      %v167 = vld [vmem:[%s139 + $0x4c] sm:$0xf]
      %v168 = vld [vmem:[%s139 + $0x50] sm:$0xf]
      %v169 = vld [vmem:[%s139 + $0x54] sm:$0xf]
      %v170 = vld [vmem:[%s139 + $0x58] sm:$0xf]
      %v171 = vld [vmem:[%s139 + $0x5c] sm:$0xf]
      %v172 = vld [vmem:[%s139 + $0x60] sm:$0xf]
      %v173 = vld [vmem:[%s139 + $0x64] sm:$0xf]
      %v174 = vld [vmem:[%s1] sm:$0xff]
      %v175 = vld [vmem:[%s1 + $0x8] sm:$0xff]
      %v176 = vld [vmem:[%s1 + $0x10] sm:$0xff]
      %v177 = vld [vmem:[%s1 + $0x18] sm:$0xff]
      %v178 = vld [vmem:[%s1 + $0x20] sm:$0xff]
      %v179 = vld [vmem:[%s1 + $0x28] sm:$0xff]
      %v180 = vld [vmem:[%s1 + $0x30] sm:$0xff]
      %v181 = vld [vmem:[%s1 + $0x38] sm:$0xff]
      %v182 = vld [vmem:[%s1 + $0x40] sm:$0xff]
      %v183 = vld [vmem:[%s1 + $0x48] sm:$0xff]
      %v184 = vld [vmem:[%s1 + $0x50] sm:$0xff]
      %v185 = vld [vmem:[%s1 + $0x58] sm:$0xff]
      %v212 = vunpack.c.l.b16 %v148
      %v213 = vunpack.c.l.b16 %v149
      %v214 = vunpack.c.l.b16 %v150
      %v215 = vunpack.c.l.b16 %v151
      %v216 = vunpack.c.l.b16 %v152
      %v217 = vunpack.c.l.b16 %v153
      %v218 = vunpack.c.l.b16 %v154
      %v219 = vunpack.c.l.b16 %v155
      %v220 = vunpack.c.l.b16 %v156
      %v221 = vunpack.c.l.b16 %v157
      %v222 = vunpack.c.l.b16 %v158
      %v223 = vunpack.c.l.b16 %v159
      %v224 = vunpack.c.l.b16 %v160
      %v225 = vunpack.c.l.b16 %v161
      %v226 = vunpack.c.l.b16 %v162
      %v227 = vunpack.c.l.b16 %v163
      %v228 = vunpack.c.l.b16 %v164
      %v229 = vunpack.c.l.b16 %v165
      %v230 = vunpack.c.l.b16 %v166
      %v231 = vunpack.c.l.b16 %v167
      %v232 = vunpack.c.l.b16 %v168
      %v233 = vunpack.c.l.b16 %v169
      %v234 = vunpack.c.l.b16 %v170
      %v235 = vunpack.c.l.b16 %v171
      %v236 = vunpack.c.l.b16 %v172
      %v237 = vunpack.c.l.b16 %v173
      %v238 = vpack.c.b16 %v213, %v212
      %v239 = vpack.c.b16 %v215, %v214
      %v240 = vpack.c.b16 %v217, %v216
      %v241 = vpack.c.b16 %v219, %v218
      %v242 = vpack.c.b16 %v221, %v220
      %v243 = vpack.c.b16 %v223, %v222
      %v244 = vpack.c.b16 %v225, %v224
      %v245 = vpack.c.b16 %v227, %v226
      %v246 = vpack.c.b16 %v229, %v228
      %v247 = vpack.c.b16 %v231, %v230
      %v248 = vpack.c.b16 %v233, %v232
      %v249 = vpack.c.b16 %v235, %v234
      %v250 = vpack.c.b16 %v237, %v236
      %v263 = vunpack.c.l.b16 %v174
      %v264 = vunpack.c.h.b16 %v174
      %v265 = vunpack.c.l.b16 %v175
      %v266 = vunpack.c.h.b16 %v175
      %v267 = vunpack.c.l.b16 %v176
      %v268 = vunpack.c.h.b16 %v176
      %v269 = vunpack.c.l.b16 %v177
      %v270 = vunpack.c.h.b16 %v177
      %v271 = vunpack.c.l.b16 %v178
      %v272 = vunpack.c.h.b16 %v178
      %v273 = vunpack.c.l.b16 %v179
      %v274 = vunpack.c.h.b16 %v179
      %v275 = vunpack.c.l.b16 %v180
      %v276 = vunpack.c.h.b16 %v180
      %v277 = vunpack.c.l.b16 %v181
      %v278 = vunpack.c.h.b16 %v181
      %v279 = vunpack.c.l.b16 %v182
      %v280 = vunpack.c.h.b16 %v182
      %v281 = vunpack.c.l.b16 %v183
      %v282 = vunpack.c.h.b16 %v183
      %v283 = vunpack.c.l.b16 %v184
      %v284 = vunpack.c.h.b16 %v184
      %v285 = vunpack.c.l.b16 %v185
      %v286 = vunpack.c.h.b16 %v185
      %v287 = vpack.c.b16 %v267, %v263
      %v288 = vpack.c.b16 %v268, %v264
      %v289 = vpack.c.b16 %v269, %v265
      %v290 = vpack.c.b16 %v270, %v266
      %v291 = vpack.c.b16 %v275, %v271
      %v292 = vpack.c.b16 %v276, %v272
      %v293 = vpack.c.b16 %v277, %v273
      %v294 = vpack.c.b16 %v278, %v274
      %v295 = vpack.c.b16 %v283, %v279
      %v296 = vpack.c.b16 %v284, %v280
      %v297 = vpack.c.b16 %v285, %v281
      %v298 = vpack.c.b16 %v286, %v282
      %vm311 = vcmask 392192
      %v313 = vsel %vm311, %v238, 0
      %v316 = vsel %vm311, %v239, 0
      %v319 = vsel %vm311, %v240, 0
      %v322 = vsel %vm311, %v241, 0
      %v325 = vsel %vm311, %v242, 0
      %v328 = vsel %vm311, %v243, 0
      %v331 = vsel %vm311, %v244, 0
      %v334 = vsel %vm311, %v245, 0
      %v337 = vsel %vm311, %v246, 0
      %v340 = vsel %vm311, %v247, 0
      %v343 = vsel %vm311, %v248, 0
      %v346 = vsel %vm311, %v249, 0
      %v349 = vsel %vm311, %v250, 0
      %351 = vmatprep.subr.bf16.mxu0 %v288
      %352 = vmatpush1.bf16.msra.mxu0 %v287
      %353 = vmatprep.subr.bf16.mxu0 %v292
      %354 = vmatpush1.bf16.msra.mxu0 %v291
      %355 = vmatprep.subr.bf16.mxu0 %v296
      %356 = vmatpush1.bf16.msra.mxu0 %v295
      %357 = vmatprep.subr.bf16.mxu0 0
      %358 = vmatpush1.bf16.msra.mxu0 0
      %359 = vmatprep.subr.bf16.mxu0 0
      %360 = vmatpush1.bf16.msra.mxu0 0
      %361 = vmatprep.subr.bf16.mxu0 0
      %362 = vmatpush1.bf16.msra.mxu0 0
      %363 = vmatprep.subr.bf16.mxu0 0
      %364 = vmatpush1.bf16.msra.mxu0 0
      %365 = vmatprep.subr.bf16.mxu0 0
      %366 = vmatpush1.bf16.msra.mxu0 0
      %367 = vmatprep.subr.bf16.mxu0 0
      %368 = vmatpush1.bf16.msra.mxu0 0
      %369 = vmatprep.subr.bf16.mxu0 0
      %370 = vmatpush1.bf16.msra.mxu0 0
      %371 = vmatprep.subr.bf16.mxu0 0
      %372 = vmatpush1.bf16.msra.mxu0 0
      %373 = vmatprep.subr.bf16.mxu0 0
      %374 = vmatpush1.bf16.msra.mxu0 0
      %375 = vmatprep.subr.bf16.mxu0 0
      %376 = vmatpush1.bf16.msra.mxu0 0
      %377 = vmatprep.subr.bf16.mxu0 0
      %378 = vmatpush1.bf16.msra.mxu0 0
      %379 = vmatprep.subr.bf16.mxu0 0
      %380 = vmatpush1.bf16.msra.mxu0 0
      %381 = vmatprep.subr.bf16.mxu0 0
      %382 = vmatpush1.bf16.msra.mxu0 0
      %383 = vmatprep.mubr.bf16.mxu0 0
      %384 = vmatmul.mubr.bf16.gmra.mrb[0].mxu0 %v313
      %v385 = vpop.f32.mrb[0].mxu0
      %v386 = vadd.f32 0.0, %v385
      %v387 = vpop.f32.mrb[0].mxu0
      %v388 = vadd.f32 0.0, %v387
      %v389 = vpop.f32.mrb[0].mxu0
      %v390 = vadd.f32 0.0, %v389
      %v391 = vpop.f32.mrb[0].mxu0
      %v392 = vadd.f32 0.0, %v391
      %393 = vmatprep.mubr.bf16.mxu0 0
      %394 = vmatmul.mubr.bf16.gmra.mrb[0].mxu0 %v316
      %v395 = vpop.f32.mrb[0].mxu0
      %v396 = vadd.f32 0.0, %v395
      %v397 = vpop.f32.mrb[0].mxu0
      %v398 = vadd.f32 0.0, %v397
      %v399 = vpop.f32.mrb[0].mxu0
      %v400 = vadd.f32 0.0, %v399
      %v401 = vpop.f32.mrb[0].mxu0
      %v402 = vadd.f32 0.0, %v401
      %403 = vmatprep.mubr.bf16.mxu0 0
      %404 = vmatmul.mubr.bf16.gmra.mrb[0].mxu0 %v319
      %v405 = vpop.f32.mrb[0].mxu0
      %v406 = vadd.f32 0.0, %v405
      %v407 = vpop.f32.mrb[0].mxu0
      %v408 = vadd.f32 0.0, %v407
      %v409 = vpop.f32.mrb[0].mxu0
      %v410 = vadd.f32 0.0, %v409
      %v411 = vpop.f32.mrb[0].mxu0
      %v412 = vadd.f32 0.0, %v411
      %413 = vmatprep.mubr.bf16.mxu0 0
      %414 = vmatmul.mubr.bf16.gmra.mrb[0].mxu0 %v322
      %v415 = vpop.f32.mrb[0].mxu0
      %v416 = vadd.f32 0.0, %v415
      %v417 = vpop.f32.mrb[0].mxu0
      %v418 = vadd.f32 0.0, %v417
      %v419 = vpop.f32.mrb[0].mxu0
      %v420 = vadd.f32 0.0, %v419
      %v421 = vpop.f32.mrb[0].mxu0
      %v422 = vadd.f32 0.0, %v421
      %423 = vmatprep.mubr.bf16.mxu0 0
      %424 = vmatmul.mubr.bf16.gmra.mrb[0].mxu0 %v325
      %v425 = vpop.f32.mrb[0].mxu0
      %v426 = vadd.f32 0.0, %v425
      %v427 = vpop.f32.mrb[0].mxu0
      %v428 = vadd.f32 0.0, %v427
      %v429 = vpop.f32.mrb[0].mxu0
      %v430 = vadd.f32 0.0, %v429
      %v431 = vpop.f32.mrb[0].mxu0
      %v432 = vadd.f32 0.0, %v431
      %433 = vmatprep.mubr.bf16.mxu0 0
      %434 = vmatmul.mubr.bf16.gmra.mrb[0].mxu0 %v328
      %v435 = vpop.f32.mrb[0].mxu0
      %v436 = vadd.f32 0.0, %v435
      %v437 = vpop.f32.mrb[0].mxu0
      %v438 = vadd.f32 0.0, %v437
      %v439 = vpop.f32.mrb[0].mxu0
      %v440 = vadd.f32 0.0, %v439
      %v441 = vpop.f32.mrb[0].mxu0
      %v442 = vadd.f32 0.0, %v441
      %443 = vmatprep.mubr.bf16.mxu0 0
      %444 = vmatmul.mubr.bf16.gmra.mrb[0].mxu0 %v331
      %v445 = vpop.f32.mrb[0].mxu0
      %v446 = vadd.f32 0.0, %v445
      %v447 = vpop.f32.mrb[0].mxu0
      %v448 = vadd.f32 0.0, %v447
      %v449 = vpop.f32.mrb[0].mxu0
      %v450 = vadd.f32 0.0, %v449
      %v451 = vpop.f32.mrb[0].mxu0
      %v452 = vadd.f32 0.0, %v451
      %453 = vmatprep.mubr.bf16.mxu0 0
      %454 = vmatmul.mubr.bf16.gmra.mrb[0].mxu0 %v334
      %v455 = vpop.f32.mrb[0].mxu0
      %v456 = vadd.f32 0.0, %v455
      %v457 = vpop.f32.mrb[0].mxu0
      %v458 = vadd.f32 0.0, %v457
      %v459 = vpop.f32.mrb[0].mxu0
      %v460 = vadd.f32 0.0, %v459
      %v461 = vpop.f32.mrb[0].mxu0
      %v462 = vadd.f32 0.0, %v461
      %463 = vmatprep.mubr.bf16.mxu0 0
      %464 = vmatmul.mubr.bf16.gmra.mrb[0].mxu0 %v337
      %v465 = vpop.f32.mrb[0].mxu0
      %v466 = vadd.f32 0.0, %v465
      %v467 = vpop.f32.mrb[0].mxu0
      %v468 = vadd.f32 0.0, %v467
      %v469 = vpop.f32.mrb[0].mxu0
      %v470 = vadd.f32 0.0, %v469
      %v471 = vpop.f32.mrb[0].mxu0
      %v472 = vadd.f32 0.0, %v471
      %473 = vmatprep.mubr.bf16.mxu0 0
      %474 = vmatmul.mubr.bf16.gmra.mrb[0].mxu0 %v340
      %v475 = vpop.f32.mrb[0].mxu0
      %v476 = vadd.f32 0.0, %v475
      %v477 = vpop.f32.mrb[0].mxu0
      %v478 = vadd.f32 0.0, %v477
      %v479 = vpop.f32.mrb[0].mxu0
      %v480 = vadd.f32 0.0, %v479
      %v481 = vpop.f32.mrb[0].mxu0
      %v482 = vadd.f32 0.0, %v481
      %483 = vmatprep.mubr.bf16.mxu0 0
      %484 = vmatmul.mubr.bf16.gmra.mrb[0].mxu0 %v343
      %v485 = vpop.f32.mrb[0].mxu0
      %v486 = vadd.f32 0.0, %v485
      %v487 = vpop.f32.mrb[0].mxu0
      %v488 = vadd.f32 0.0, %v487
      %v489 = vpop.f32.mrb[0].mxu0
      %v490 = vadd.f32 0.0, %v489
      %v491 = vpop.f32.mrb[0].mxu0
      %v492 = vadd.f32 0.0, %v491
      %493 = vmatprep.mubr.bf16.mxu0 0
      %494 = vmatmul.mubr.bf16.gmra.mrb[0].mxu0 %v346
      %v495 = vpop.f32.mrb[0].mxu0
      %v496 = vadd.f32 0.0, %v495
      %v497 = vpop.f32.mrb[0].mxu0
      %v498 = vadd.f32 0.0, %v497
      %v499 = vpop.f32.mrb[0].mxu0
      %v500 = vadd.f32 0.0, %v499
      %v501 = vpop.f32.mrb[0].mxu0
      %v502 = vadd.f32 0.0, %v501
      %503 = vmatprep.mubr.bf16.mxu0 0
      %504 = vmatmul.mubr.bf16.gmra.mrb[0].mxu0 %v349
      %v505 = vpop.f32.mrb[0].mxu0
      %v506 = vadd.f32 0.0, %v505
      %v507 = vpop.f32.mrb[0].mxu0
      %v508 = vadd.f32 0.0, %v507
      %v509 = vpop.f32.mrb[0].mxu0
      %v510 = vadd.f32 0.0, %v509
      %v511 = vpop.f32.mrb[0].mxu0
      %v512 = vadd.f32 0.0, %v511
      %513 = vdwg.mxu0
      %514 = vmatprep.subr.bf16.mxu0 %v290
      %515 = vmatpush1.bf16.msra.mxu0 %v289
      %516 = vmatprep.subr.bf16.mxu0 %v294
      %517 = vmatpush1.bf16.msra.mxu0 %v293
      %518 = vmatprep.subr.bf16.mxu0 %v298
      %519 = vmatpush1.bf16.msra.mxu0 %v297
      %520 = vmatprep.subr.bf16.mxu0 0
      %521 = vmatpush1.bf16.msra.mxu0 0
      %522 = vmatprep.subr.bf16.mxu0 0
      %523 = vmatpush1.bf16.msra.mxu0 0
      %524 = vmatprep.subr.bf16.mxu0 0
      %525 = vmatpush1.bf16.msra.mxu0 0
      %526 = vmatprep.subr.bf16.mxu0 0
      %527 = vmatpush1.bf16.msra.mxu0 0
      %528 = vmatprep.subr.bf16.mxu0 0
      %529 = vmatpush1.bf16.msra.mxu0 0
      %530 = vmatprep.subr.bf16.mxu0 0
      %531 = vmatpush1.bf16.msra.mxu0 0
      %532 = vmatprep.subr.bf16.mxu0 0
      %533 = vmatpush1.bf16.msra.mxu0 0
      %534 = vmatprep.subr.bf16.mxu0 0
      %535 = vmatpush1.bf16.msra.mxu0 0
      %536 = vmatprep.subr.bf16.mxu0 0
      %537 = vmatpush1.bf16.msra.mxu0 0
      %538 = vmatprep.subr.bf16.mxu0 0
      %539 = vmatpush1.bf16.msra.mxu0 0
      %540 = vmatprep.subr.bf16.mxu0 0
      %541 = vmatpush1.bf16.msra.mxu0 0
      %542 = vmatprep.subr.bf16.mxu0 0
      %543 = vmatpush1.bf16.msra.mxu0 0
      %544 = vmatprep.subr.bf16.mxu0 0
      %545 = vmatpush1.bf16.msra.mxu0 0
      %546 = vmatprep.mubr.bf16.mxu0 0
      %547 = vmatmul.mubr.bf16.gmra.mrb[0].mxu0 %v313
      %v548 = vpop.f32.mrb[0].mxu0
      %v549 = vadd.f32 0.0, %v548
      %v550 = vpop.f32.mrb[0].mxu0
      %v551 = vadd.f32 0.0, %v550
      %v552 = vpop.f32.mrb[0].mxu0
      %v553 = vadd.f32 0.0, %v552
      %v554 = vpop.f32.mrb[0].mxu0
      %v555 = vadd.f32 0.0, %v554
      %556 = vmatprep.mubr.bf16.mxu0 0
      %557 = vmatmul.mubr.bf16.gmra.mrb[0].mxu0 %v316
      %v558 = vpop.f32.mrb[0].mxu0
      %v559 = vadd.f32 0.0, %v558
      %v560 = vpop.f32.mrb[0].mxu0
      %v561 = vadd.f32 0.0, %v560
      %v562 = vpop.f32.mrb[0].mxu0
      %v563 = vadd.f32 0.0, %v562
      %v564 = vpop.f32.mrb[0].mxu0
      %v565 = vadd.f32 0.0, %v564
      %566 = vmatprep.mubr.bf16.mxu0 0
      %567 = vmatmul.mubr.bf16.gmra.mrb[0].mxu0 %v319
      %v568 = vpop.f32.mrb[0].mxu0
      %v569 = vadd.f32 0.0, %v568
      %v570 = vpop.f32.mrb[0].mxu0
      %v571 = vadd.f32 0.0, %v570
      %v572 = vpop.f32.mrb[0].mxu0
      %v573 = vadd.f32 0.0, %v572
      %v574 = vpop.f32.mrb[0].mxu0
      %v575 = vadd.f32 0.0, %v574
      %576 = vmatprep.mubr.bf16.mxu0 0
      %577 = vmatmul.mubr.bf16.gmra.mrb[0].mxu0 %v322
      %v578 = vpop.f32.mrb[0].mxu0
      %v579 = vadd.f32 0.0, %v578
      %v580 = vpop.f32.mrb[0].mxu0
      %v581 = vadd.f32 0.0, %v580
      %v582 = vpop.f32.mrb[0].mxu0
      %v583 = vadd.f32 0.0, %v582
      %v584 = vpop.f32.mrb[0].mxu0
      %v585 = vadd.f32 0.0, %v584
      %586 = vmatprep.mubr.bf16.mxu0 0
      %587 = vmatmul.mubr.bf16.gmra.mrb[0].mxu0 %v325
      %v588 = vpop.f32.mrb[0].mxu0
      %v589 = vadd.f32 0.0, %v588
      %v590 = vpop.f32.mrb[0].mxu0
      %v591 = vadd.f32 0.0, %v590
      %v592 = vpop.f32.mrb[0].mxu0
      %v593 = vadd.f32 0.0, %v592
      %v594 = vpop.f32.mrb[0].mxu0
      %v595 = vadd.f32 0.0, %v594
      %596 = vmatprep.mubr.bf16.mxu0 0
      %597 = vmatmul.mubr.bf16.gmra.mrb[0].mxu0 %v328
      %v598 = vpop.f32.mrb[0].mxu0
      %v599 = vadd.f32 0.0, %v598
      %v600 = vpop.f32.mrb[0].mxu0
      %v601 = vadd.f32 0.0, %v600
      %v602 = vpop.f32.mrb[0].mxu0
      %v603 = vadd.f32 0.0, %v602
      %v604 = vpop.f32.mrb[0].mxu0
      %v605 = vadd.f32 0.0, %v604
      %606 = vmatprep.mubr.bf16.mxu0 0
      %607 = vmatmul.mubr.bf16.gmra.mrb[0].mxu0 %v331
      %v608 = vpop.f32.mrb[0].mxu0
      %v609 = vadd.f32 0.0, %v608
      %v610 = vpop.f32.mrb[0].mxu0
      %v611 = vadd.f32 0.0, %v610
      %v612 = vpop.f32.mrb[0].mxu0
      %v613 = vadd.f32 0.0, %v612
      %v614 = vpop.f32.mrb[0].mxu0
      %v615 = vadd.f32 0.0, %v614
      %616 = vmatprep.mubr.bf16.mxu0 0
      %617 = vmatmul.mubr.bf16.gmra.mrb[0].mxu0 %v334
      %v618 = vpop.f32.mrb[0].mxu0
      %v619 = vadd.f32 0.0, %v618
      %v620 = vpop.f32.mrb[0].mxu0
      %v621 = vadd.f32 0.0, %v620
      %v622 = vpop.f32.mrb[0].mxu0
      %v623 = vadd.f32 0.0, %v622
      %v624 = vpop.f32.mrb[0].mxu0
      %v625 = vadd.f32 0.0, %v624
      %626 = vmatprep.mubr.bf16.mxu0 0
      %627 = vmatmul.mubr.bf16.gmra.mrb[0].mxu0 %v337
      %v628 = vpop.f32.mrb[0].mxu0
      %v629 = vadd.f32 0.0, %v628
      %v630 = vpop.f32.mrb[0].mxu0
      %v631 = vadd.f32 0.0, %v630
      %v632 = vpop.f32.mrb[0].mxu0
      %v633 = vadd.f32 0.0, %v632
      %v634 = vpop.f32.mrb[0].mxu0
      %v635 = vadd.f32 0.0, %v634
      %636 = vmatprep.mubr.bf16.mxu0 0
      %637 = vmatmul.mubr.bf16.gmra.mrb[0].mxu0 %v340
      %v638 = vpop.f32.mrb[0].mxu0
      %v639 = vadd.f32 0.0, %v638
      %v640 = vpop.f32.mrb[0].mxu0
      %v641 = vadd.f32 0.0, %v640
      %v642 = vpop.f32.mrb[0].mxu0
      %v643 = vadd.f32 0.0, %v642
      %v644 = vpop.f32.mrb[0].mxu0
      %v645 = vadd.f32 0.0, %v644
      %646 = vmatprep.mubr.bf16.mxu0 0
      %647 = vmatmul.mubr.bf16.gmra.mrb[0].mxu0 %v343
      %v648 = vpop.f32.mrb[0].mxu0
      %v649 = vadd.f32 0.0, %v648
      %v650 = vpop.f32.mrb[0].mxu0
      %v651 = vadd.f32 0.0, %v650
      %v652 = vpop.f32.mrb[0].mxu0
      %v653 = vadd.f32 0.0, %v652
      %v654 = vpop.f32.mrb[0].mxu0
      %v655 = vadd.f32 0.0, %v654
      %656 = vmatprep.mubr.bf16.mxu0 0
      %657 = vmatmul.mubr.bf16.gmra.mrb[0].mxu0 %v346
      %v658 = vpop.f32.mrb[0].mxu0
      %v659 = vadd.f32 0.0, %v658
      %v660 = vpop.f32.mrb[0].mxu0
      %v661 = vadd.f32 0.0, %v660
      %v662 = vpop.f32.mrb[0].mxu0
      %v663 = vadd.f32 0.0, %v662
      %v664 = vpop.f32.mrb[0].mxu0
      %v665 = vadd.f32 0.0, %v664
      %666 = vmatprep.mubr.bf16.mxu0 0
      %667 = vmatmul.mubr.bf16.gmra.mrb[0].mxu0 %v349
      %v668 = vpop.f32.mrb[0].mxu0
      %v669 = vadd.f32 0.0, %v668
      %v670 = vpop.f32.mrb[0].mxu0
      %v671 = vadd.f32 0.0, %v670
      %v672 = vpop.f32.mrb[0].mxu0
      %v673 = vadd.f32 0.0, %v672
      %v674 = vpop.f32.mrb[0].mxu0
      %v675 = vadd.f32 0.0, %v674
      %676 = vdwg.mxu0
      %v677 = vtanh.pop %v386
      %v678 = vtanh.pop %v388
      %v679 = vtanh.pop %v549
      %v680 = vtanh.pop %v551
      %v681 = vtanh.pop %v390
      %v682 = vtanh.pop %v392
      %v683 = vtanh.pop %v553
      %v684 = vtanh.pop %v555
      %v685 = vtanh.pop %v396
      %v686 = vtanh.pop %v398
      %v687 = vtanh.pop %v559
      %v688 = vtanh.pop %v561
      %v689 = vtanh.pop %v400
      %v690 = vtanh.pop %v402
      %v691 = vtanh.pop %v563
      %v692 = vtanh.pop %v565
      %v693 = vtanh.pop %v406
      %v694 = vtanh.pop %v408
      %v695 = vtanh.pop %v569
      %v696 = vtanh.pop %v571
      %v697 = vtanh.pop %v410
      %v698 = vtanh.pop %v412
      %v699 = vtanh.pop %v573
      %v700 = vtanh.pop %v575
      %v701 = vtanh.pop %v416
      %v702 = vtanh.pop %v418
      %v703 = vtanh.pop %v579
      %v704 = vtanh.pop %v581
      %v705 = vtanh.pop %v420
      %v706 = vtanh.pop %v422
      %v707 = vtanh.pop %v583
      %v708 = vtanh.pop %v585
      %v709 = vtanh.pop %v426
      %v710 = vtanh.pop %v428
      %v711 = vtanh.pop %v589
      %v712 = vtanh.pop %v591
      %v713 = vtanh.pop %v430
      %v714 = vtanh.pop %v432
      %v715 = vtanh.pop %v593
      %v716 = vtanh.pop %v595
      %v717 = vtanh.pop %v436
      %v718 = vtanh.pop %v438
      %v719 = vtanh.pop %v599
      %v720 = vtanh.pop %v601
      %v721 = vtanh.pop %v440
      %v722 = vtanh.pop %v442
      %v723 = vtanh.pop %v603
      %v724 = vtanh.pop %v605
      %v725 = vtanh.pop %v446
      %v726 = vtanh.pop %v448
      %v727 = vtanh.pop %v609
      %v728 = vtanh.pop %v611
      %v729 = vtanh.pop %v450
      %v730 = vtanh.pop %v452
      %v731 = vtanh.pop %v613
      %v732 = vtanh.pop %v615
      %v733 = vtanh.pop %v456
      %v734 = vtanh.pop %v458
      %v735 = vtanh.pop %v619
      %v736 = vtanh.pop %v621
      %v737 = vtanh.pop %v460
      %v738 = vtanh.pop %v462
      %v739 = vtanh.pop %v623
      %v740 = vtanh.pop %v625
      %v741 = vtanh.pop %v466
      %v742 = vtanh.pop %v468
      %v743 = vtanh.pop %v629
      %v744 = vtanh.pop %v631
      %v745 = vtanh.pop %v470
      %v746 = vtanh.pop %v472
      %v747 = vtanh.pop %v633
      %v748 = vtanh.pop %v635
      %v749 = vtanh.pop %v476
      %v750 = vtanh.pop %v478
      %v751 = vtanh.pop %v639
      %v752 = vtanh.pop %v641
      %v753 = vtanh.pop %v480
      %v754 = vtanh.pop %v482
      %v755 = vtanh.pop %v643
      %v756 = vtanh.pop %v645
      %v757 = vtanh.pop %v486
      %v758 = vtanh.pop %v488
      %v759 = vtanh.pop %v649
      %v760 = vtanh.pop %v651
      %v761 = vtanh.pop %v490
      %v762 = vtanh.pop %v492
      %v763 = vtanh.pop %v653
      %v764 = vtanh.pop %v655
      %v765 = vtanh.pop %v496
      %v766 = vtanh.pop %v498
      %v767 = vtanh.pop %v659
      %v768 = vtanh.pop %v661
      %v769 = vtanh.pop %v500
      %v770 = vtanh.pop %v502
      %v771 = vtanh.pop %v663
      %v772 = vtanh.pop %v665
      %v773 = vtanh.pop %v506
      %v774 = vtanh.pop %v508
      %v775 = vtanh.pop %v669
      %v776 = vtanh.pop %v671
      %v777 = vtanh.pop %v510
      %v778 = vtanh.pop %v512
      %v779 = vtanh.pop %v673
      %v780 = vtanh.pop %v675
      %v781 = vadd.f32 %v677, %v678
      %v782 = vadd.f32 %v681, %v682
      %v783 = vadd.f32 %v685, %v686
      %v784 = vadd.f32 %v689, %v690
      %v785 = vadd.f32 %v693, %v694
      %v786 = vadd.f32 %v697, %v698
      %v787 = vadd.f32 %v701, %v702
      %v788 = vadd.f32 %v705, %v706
      %v789 = vadd.f32 %v709, %v710
      %v790 = vadd.f32 %v713, %v714
      %v791 = vadd.f32 %v717, %v718
      %v792 = vadd.f32 %v721, %v722
      %v793 = vadd.f32 %v725, %v726
      %v794 = vadd.f32 %v729, %v730
      %v795 = vadd.f32 %v733, %v734
      %v796 = vadd.f32 %v737, %v738
      %v797 = vadd.f32 %v741, %v742
      %v798 = vadd.f32 %v745, %v746
      %v799 = vadd.f32 %v749, %v750
      %v800 = vadd.f32 %v753, %v754
      %v801 = vadd.f32 %v757, %v758
      %v802 = vadd.f32 %v761, %v762
      %v803 = vadd.f32 %v765, %v766
      %v804 = vadd.f32 %v769, %v770
      %v805 = vadd.f32 %v773, %v774
      %v806 = vadd.f32 %v777, %v778
      %v807 = vadd.f32 %v781, %v679
      %v808 = vadd.f32 %v782, %v683
      %v809 = vadd.f32 %v783, %v687
      %v810 = vadd.f32 %v784, %v691
      %v811 = vadd.f32 %v785, %v695
      %v812 = vadd.f32 %v786, %v699
      %v813 = vadd.f32 %v787, %v703
      %v814 = vadd.f32 %v788, %v707
      %v815 = vadd.f32 %v789, %v711
      %v816 = vadd.f32 %v790, %v715
      %v817 = vadd.f32 %v791, %v719
      %v818 = vadd.f32 %v792, %v723
      %v819 = vadd.f32 %v793, %v727
      %v820 = vadd.f32 %v794, %v731
      %v821 = vadd.f32 %v795, %v735
      %v822 = vadd.f32 %v796, %v739
      %v823 = vadd.f32 %v797, %v743
      %v824 = vadd.f32 %v798, %v747
      %v825 = vadd.f32 %v799, %v751
      %v826 = vadd.f32 %v800, %v755
      %v827 = vadd.f32 %v801, %v759
      %v828 = vadd.f32 %v802, %v763
      %v829 = vadd.f32 %v803, %v767
      %v830 = vadd.f32 %v804, %v771
      %v831 = vadd.f32 %v805, %v775
      %v832 = vadd.f32 %v806, %v779
      %v833 = vadd.f32 %v807, %v680
      %v834 = vadd.f32 %v808, %v684
      %v835 = vadd.f32 %v809, %v688
      %v836 = vadd.f32 %v810, %v692
      %v837 = vadd.f32 %v811, %v696
      %v838 = vadd.f32 %v812, %v700
      %v839 = vadd.f32 %v813, %v704
      %v840 = vadd.f32 %v814, %v708
      %v841 = vadd.f32 %v815, %v712
      %v842 = vadd.f32 %v816, %v716
      %v843 = vadd.f32 %v817, %v720
      %v844 = vadd.f32 %v818, %v724
      %v845 = vadd.f32 %v819, %v728
      %v846 = vadd.f32 %v820, %v732
      %v847 = vadd.f32 %v821, %v736
      %v848 = vadd.f32 %v822, %v740
      %v849 = vadd.f32 %v823, %v744
      %v850 = vadd.f32 %v824, %v748
      %v851 = vadd.f32 %v825, %v752
      %v852 = vadd.f32 %v826, %v756
      %v853 = vadd.f32 %v827, %v760
      %v854 = vadd.f32 %v828, %v764
      %v855 = vadd.f32 %v829, %v768
      %v856 = vadd.f32 %v830, %v772
      %v857 = vadd.f32 %v831, %v776
      %v858 = vadd.f32 %v832, %v780
      %v859 = vmul.f32 %v833, 0.25
      %v860 = vmul.f32 %v834, 0.25
      %v861 = vmul.f32 %v835, 0.25
      %v862 = vmul.f32 %v836, 0.25
      %v863 = vmul.f32 %v837, 0.25
      %v864 = vmul.f32 %v838, 0.25
      %v865 = vmul.f32 %v839, 0.25
      %v866 = vmul.f32 %v840, 0.25
      %v867 = vmul.f32 %v841, 0.25
      %v868 = vmul.f32 %v842, 0.25
      %v869 = vmul.f32 %v843, 0.25
      %v870 = vmul.f32 %v844, 0.25
      %v871 = vmul.f32 %v845, 0.25
      %v872 = vmul.f32 %v846, 0.25
      %v873 = vmul.f32 %v847, 0.25
      %v874 = vmul.f32 %v848, 0.25
      %v875 = vmul.f32 %v849, 0.25
      %v876 = vmul.f32 %v850, 0.25
      %v877 = vmul.f32 %v851, 0.25
      %v878 = vmul.f32 %v852, 0.25
      %v879 = vmul.f32 %v853, 0.25
      %v880 = vmul.f32 %v854, 0.25
      %v881 = vmul.f32 %v855, 0.25
      %v882 = vmul.f32 %v856, 0.25
      %v883 = vmul.f32 %v857, 0.25
      %v884 = vmul.f32 %v858, 0.25
      %v885 = vpack.c.bf16 %v860, %v859
      %v886 = vpack.c.bf16 %v862, %v861
      %v887 = vpack.c.bf16 %v864, %v863
      %v888 = vpack.c.bf16 %v866, %v865
      %v889 = vpack.c.bf16 %v868, %v867
      %v890 = vpack.c.bf16 %v870, %v869
      %v891 = vpack.c.bf16 %v872, %v871
      %v892 = vpack.c.bf16 %v874, %v873
      %v893 = vpack.c.bf16 %v876, %v875
      %v894 = vpack.c.bf16 %v878, %v877
      %v895 = vpack.c.bf16 %v880, %v879
      %v896 = vpack.c.bf16 %v882, %v881
      %v897 = vpack.c.bf16 %v884, %v883
      %v911 = vunpack.c.l.b16 %v885
      %v912 = vunpack.c.h.b16 %v885
      %v913 = vunpack.c.l.b16 %v886
      %v914 = vunpack.c.h.b16 %v886
      %v915 = vunpack.c.l.b16 %v887
      %v916 = vunpack.c.h.b16 %v887
      %v917 = vunpack.c.l.b16 %v888
      %v918 = vunpack.c.h.b16 %v888
      %v919 = vunpack.c.l.b16 %v889
      %v920 = vunpack.c.h.b16 %v889
      %v921 = vunpack.c.l.b16 %v890
      %v922 = vunpack.c.h.b16 %v890
      %v923 = vunpack.c.l.b16 %v891
      %v924 = vunpack.c.h.b16 %v891
      %v925 = vunpack.c.l.b16 %v892
      %v926 = vunpack.c.h.b16 %v892
      %v927 = vunpack.c.l.b16 %v893
      %v928 = vunpack.c.h.b16 %v893
      %v929 = vunpack.c.l.b16 %v894
      %v930 = vunpack.c.h.b16 %v894
      %v931 = vunpack.c.l.b16 %v895
      %v932 = vunpack.c.h.b16 %v895
      %v933 = vunpack.c.l.b16 %v896
      %v934 = vunpack.c.h.b16 %v896
      %v935 = vunpack.c.l.b16 %v897
      %v936 = vunpack.c.h.b16 %v897
      %v937 = vpack.c.b16 %v911, %v911
      %v938 = vpack.c.b16 %v912, %v912
      %v939 = vpack.c.b16 %v913, %v913
      %v940 = vpack.c.b16 %v914, %v914
      %v941 = vpack.c.b16 %v915, %v915
      %v942 = vpack.c.b16 %v916, %v916
      %v943 = vpack.c.b16 %v917, %v917
      %v944 = vpack.c.b16 %v918, %v918
      %v945 = vpack.c.b16 %v919, %v919
      %v946 = vpack.c.b16 %v920, %v920
      %v947 = vpack.c.b16 %v921, %v921
      %v948 = vpack.c.b16 %v922, %v922
      %v949 = vpack.c.b16 %v923, %v923
      %v950 = vpack.c.b16 %v924, %v924
      %v951 = vpack.c.b16 %v925, %v925
      %v952 = vpack.c.b16 %v926, %v926
      %v953 = vpack.c.b16 %v927, %v927
      %v954 = vpack.c.b16 %v928, %v928
      %v955 = vpack.c.b16 %v929, %v929
      %v956 = vpack.c.b16 %v930, %v930
      %v957 = vpack.c.b16 %v931, %v931
      %v958 = vpack.c.b16 %v932, %v932
      %v959 = vpack.c.b16 %v933, %v933
      %v960 = vpack.c.b16 %v934, %v934
      %v961 = vpack.c.b16 %v935, %v935
      %v962 = vpack.c.b16 %v936, %v936
      %989 = vst [vmem:[%s145] sm:$0xf] %v937
      %990 = vst [vmem:[%s145 + $0x4] sm:$0xf] %v938
      %991 = vst [vmem:[%s145 + $0x8] sm:$0xf] %v939
      %992 = vst [vmem:[%s145 + $0xc] sm:$0xf] %v940
      %993 = vst [vmem:[%s145 + $0x10] sm:$0xf] %v941
      %994 = vst [vmem:[%s145 + $0x14] sm:$0xf] %v942
      %995 = vst [vmem:[%s145 + $0x18] sm:$0xf] %v943
      %996 = vst [vmem:[%s145 + $0x1c] sm:$0xf] %v944
      %997 = vst [vmem:[%s145 + $0x20] sm:$0xf] %v945
      %998 = vst [vmem:[%s145 + $0x24] sm:$0xf] %v946
      %999 = vst [vmem:[%s145 + $0x28] sm:$0xf] %v947
      %1000 = vst [vmem:[%s145 + $0x2c] sm:$0xf] %v948
      %1001 = vst [vmem:[%s145 + $0x30] sm:$0xf] %v949
      %1002 = vst [vmem:[%s145 + $0x34] sm:$0xf] %v950
      %1003 = vst [vmem:[%s145 + $0x38] sm:$0xf] %v951
      %1004 = vst [vmem:[%s145 + $0x3c] sm:$0xf] %v952
      %1005 = vst [vmem:[%s145 + $0x40] sm:$0xf] %v953
      %1006 = vst [vmem:[%s145 + $0x44] sm:$0xf] %v954
      %1007 = vst [vmem:[%s145 + $0x48] sm:$0xf] %v955
      %1008 = vst [vmem:[%s145 + $0x4c] sm:$0xf] %v956
      %1009 = vst [vmem:[%s145 + $0x50] sm:$0xf] %v957
      %1010 = vst [vmem:[%s145 + $0x54] sm:$0xf] %v958
      %1011 = vst [vmem:[%s145 + $0x58] sm:$0xf] %v959
      %1012 = vst [vmem:[%s145 + $0x5c] sm:$0xf] %v960
      %1013 = vst [vmem:[%s145 + $0x60] sm:$0xf] %v961
      %1014 = vst [vmem:[%s145 + $0x64] sm:$0xf] %v962
      %s1015 = smul.u32 26, %s13
      %p1016 = scmp.lt.s32.totalorder %s1015, 51
      %s1017 = scalar_select %p1016, %s1015, 51
      %s1018 = smul.addr %s1017, 4
      %s1019 = scalar_lea.vmem %s2, %s1018
      // Predicated region
      $region29: #{lenet5_forward.3} parent=27 // pred_check
        %p1020 = pneg %p78
      $region30: #{lenet5_forward.3} parent=27 // pred_check_branch
        %1022 = sbr.rel (%p1020) target = $region32
      $region31: #{lenet5_forward.3} parent=27 // pred_region
        %s1023 = smul.u32 26, %s13
      $region32: #{lenet5_forward.3} parent=27 // pred_fallthru
        _
    $region28: #{lenet5_forward.3} parent=5 // pred_fallthru
      _
    %p1024 = scmp.le.s32.totalorder 2, %s8
    // Predicated region
    $region33: #{lenet5_forward.3} parent=5 // pred_check
      %p1025 = pneg %p1024
    $region34: #{lenet5_forward.3} parent=5 // pred_check_branch
      %1027 = sbr.rel (%p1025) target = $region36
    $region35: #{lenet5_forward.3} parent=5 // pred_region
      %s1028 = ssub.s32 %s8, 2
      // Predicated region
      $region37: #{lenet5_forward.3} parent=35 // pred_check
        %p1029 = pneg %p84
      $region38: #{lenet5_forward.3} parent=35 // pred_check_branch
        %1031 = sbr.rel (%p1029) target = $region40
      $region39: #{lenet5_forward.3} parent=35 // pred_region
        %s1032 = smul.u32 26, %s14
        %p1033 = scmp.lt.s32.totalorder %s1032, 51
        %s1034 = scalar_select %p1033, %s1032, 51
        %s1035 = smul.addr %s1034, 4
        %s1036 = scalar_lea.vmem %s2, %s1035
      $region40: #{lenet5_forward.3} parent=35 // pred_fallthru
        _
    $region36: #{lenet5_forward.3} parent=5 // pred_fallthru
      _
  $region6: #{lenet5_forward.3} parent=0 // loop_footer
    %s12 = sadd.s32 1, %s8
  $region7: #{lenet5_forward.3} parent=0 // loop_footer_branch
    %7 = sbr.rel target = $region3
  $region8: #{lenet5_forward.3} parent=0 // loop_exit
    _

// kernel: lenet5_forward.4
$region0: #{lenet5_forward.4}
  #allocation0 [shape = 'u32[]', space=smem, size = 0x4, offset = 0x4, fixed_abs, tag = 'smem constant byte address 0x4 - core index']
  #allocation1 [shape = 'u32[144,128]{1,0:T(1,128)}', space=vmem, size = 0x12000, scoped, tag = 'internal scratch']
  %s0 = inlined_call_operand.vmem [shape: bf16[64,224], index: 0, kind: input, shape index: {}]
  %s1 = inlined_call_operand.vmem [shape: bf16[224,512], index: 1, kind: input, shape index: {}]
  %s2 = inlined_call_operand.vmem [shape: bf16[64,128], index: 2, kind: output, shape index: {}]
  %s3 = sld [smem:[#allocation0]]
  $region41: #{lenet5_forward.4} parent=0
    _
  %s5 = ssub.s32 1, %s3
  %s6 = scalar_select 0, %s5, %s3
  loop: start=0, step=1, limit=4
  $region2: #{lenet5_forward.4} parent=0 // loop_pre_header
    _
  $region3: #{lenet5_forward.4} parent=0 // loop_header
    %s8 = sphi 0, %s12
    %p9 = scmp.ge.s32.totalorder %s8, 4
    %s18 = sphi 0, %s20
    %s21 = sphi 0, %s18
    %s22 = sphi 0, %s21
    %s38 = sphi 0, %s22
    %s42 = sphi 0, %s42
    %s44 = sphi 0, %s42
    %s45 = sphi 0, %s44
    %s59 = sphi 0, %s45
    %s65 = sphi 0, %s67
    %s68 = sphi 0, %s65
    %s69 = sphi 0, %s68
    %s85 = sphi 0, %s69
  $region4: #{lenet5_forward.4} parent=0 // loop_header_branch
    %11 = sbr.rel (%p9) target = $region8
  $region5: #{lenet5_forward.4} parent=0 // loop_body
    %s13 = ssub.s32 %s8, 1
    %s14 = ssub.s32 %s8, 2
    %s15 = sadd.s32 %s8, 1
    %s16 = ssub.s32 %s8, %s15
    %p17 = scmp.eq.s32.totalorder %s16, 0
    %s19 = sadd.s32 %s18, 1
    %s20 = scalar_select %p17, %s18, %s19
    %p23 = pneg %p17
    %p24 = scmp.eq.s32.totalorder %s8, 1
    %p25 = por %p23, %p24
    %p26 = scmp.ne.s32.totalorder %s18, %s21
    %p27 = scmp.eq.s32.totalorder %s8, 0
    %p28 = por %p26, %p27
    %p29 = scmp.ne.s32.totalorder %s18, %s21
    %p30 = scmp.eq.s32.totalorder %s13, 1
    %p31 = por %p29, %p30
    %p32 = scmp.ne.s32.totalorder %s21, %s22
    %p33 = scmp.eq.s32.totalorder %s13, 0
    %p34 = por %p32, %p33
    %p35 = scmp.ne.s32.totalorder %s21, %s22
    %p36 = scmp.eq.s32.totalorder %s14, 1
    %p37 = por %p35, %p36
    %p39 = scmp.ne.s32.totalorder %s22, %s38
    %p40 = scmp.eq.s32.totalorder %s14, 0
    %p41 = por %p39, %p40
    %s43 = sadd.s32 %s42, 1
    %p46 = scmp.eq.s32.totalorder %s8, 1
    %p47 = scmp.ne.s32.totalorder %s42, %s44
    %p48 = scmp.eq.s32.totalorder %s8, 0
    %p49 = por %p47, %p48
    %p50 = scmp.ne.s32.totalorder %s42, %s44
    %p51 = scmp.eq.s32.totalorder %s13, 1
    %p52 = por %p50, %p51
    %p53 = scmp.ne.s32.totalorder %s44, %s45
    %p54 = scmp.eq.s32.totalorder %s13, 0
    %p55 = por %p53, %p54
    %p56 = scmp.ne.s32.totalorder %s44, %s45
    %p57 = scmp.eq.s32.totalorder %s14, 1
    %p58 = por %p56, %p57
    %p60 = scmp.ne.s32.totalorder %s45, %s59
    %p61 = scmp.eq.s32.totalorder %s14, 0
    %p62 = por %p60, %p61
    %s63 = ssub.s32 %s8, %s15
    %p64 = scmp.eq.s32.totalorder %s63, 0
    %s66 = sadd.s32 %s65, 1
    %s67 = scalar_select %p64, %s65, %s66
    %p70 = pneg %p64
    %p71 = scmp.eq.s32.totalorder %s8, 1
    %p72 = por %p70, %p71
    %p73 = scmp.ne.s32.totalorder %s65, %s68
    %p74 = scmp.eq.s32.totalorder %s8, 0
    %p75 = por %p73, %p74
    %p76 = scmp.ne.s32.totalorder %s65, %s68
    %p77 = scmp.eq.s32.totalorder %s13, 1
    %p78 = por %p76, %p77
    %p79 = scmp.ne.s32.totalorder %s68, %s69
    %p80 = scmp.eq.s32.totalorder %s13, 0
    %p81 = por %p79, %p80
    %p82 = scmp.ne.s32.totalorder %s68, %s69
    %p83 = scmp.eq.s32.totalorder %s14, 1
    %p84 = por %p82, %p83
    %p86 = scmp.ne.s32.totalorder %s69, %s85
    %p87 = scmp.eq.s32.totalorder %s14, 0
    %p88 = por %p86, %p87
    %p89 = scmp.le.s32.totalorder 1, %s8
    %p90 = scmp.lt.s32.totalorder %s8, 3
    %p91 = pnand %p89, %p90
    %p92 = pneg %p91
    // Predicated region
    $region9: #{lenet5_forward.4} parent=5 // pred_check
      _
    $region10: #{lenet5_forward.4} parent=5 // pred_check_branch
      %94 = sbr.rel (%p91) target = $region12
    $region11: #{lenet5_forward.4} parent=5 // pred_region
      %s95 = ssub.s32 %s8, 1
      // Predicated region
      $region13: #{lenet5_forward.4} parent=11 // pred_check
        %p96 = pneg %p55
      $region14: #{lenet5_forward.4} parent=11 // pred_check_branch
        %98 = sbr.rel (%p96) target = $region16
      $region15: #{lenet5_forward.4} parent=11 // pred_region
        _
      $region16: #{lenet5_forward.4} parent=11 // pred_fallthru
        _
    $region12: #{lenet5_forward.4} parent=5 // pred_fallthru
      _
    %p99 = scmp.lt.s32.totalorder %s8, 2
    // Predicated region
    $region17: #{lenet5_forward.4} parent=5 // pred_check
      %p100 = pneg %p99
    $region18: #{lenet5_forward.4} parent=5 // pred_check_branch
      %102 = sbr.rel (%p100) target = $region20
    $region19: #{lenet5_forward.4} parent=5 // pred_region
      // Predicated region
      $region21: #{lenet5_forward.4} parent=19 // pred_check
        %p103 = pneg %p28
      $region22: #{lenet5_forward.4} parent=19 // pred_check_branch
        %105 = sbr.rel (%p103) target = $region24
      $region23: #{lenet5_forward.4} parent=19 // pred_region
        %s106 = smul.u32 4, %s8
        %p107 = scmp.lt.s32.totalorder %s106, 7
        %s108 = scalar_select %p107, %s106, 7
        %s109 = smul.addr %s108, 2
        %s110 = smul.addr %s109, 4
        %s111 = scalar_lea.vmem %s0, %s110
        %s112 = smul.u32 4, %s8
      $region24: #{lenet5_forward.4} parent=19 // pred_fallthru
        _
    $region20: #{lenet5_forward.4} parent=5 // pred_fallthru
      _
    %p113 = scmp.le.s32.totalorder 1, %s8
    %p114 = scmp.lt.s32.totalorder %s8, 3
    %p115 = pnand %p113, %p114
    %p116 = pneg %p115
    // Predicated region
    $region25: #{lenet5_forward.4} parent=5 // pred_check
      _
    $region26: #{lenet5_forward.4} parent=5 // pred_check_branch
      %118 = sbr.rel (%p115) target = $region28
    $region27: #{lenet5_forward.4} parent=5 // pred_region
      %s119 = ssub.s32 %s8, 1
      %s120 = smul.u32 4, %s13
      %p121 = scmp.lt.s32.totalorder %s120, 7
      %s122 = scalar_select %p121, %s120, 7
      %s123 = smul.addr %s122, 2
      %s124 = smul.addr %s123, 4
      %s125 = scalar_lea.vmem %s0, %s124
      %p126 = pneg %p34
      %p127 = pneg %p31
      %p128 = pneg %p55
      %p129 = pneg %p52
      %p130 = pneg %p81
      %p131 = pneg %p78
      %s132 = smul.u32 4, %s13
      %p133 = scmp.lt.s32.totalorder %s132, 7
      %s134 = scalar_select %p133, %s132, 7
      %s135 = smul.addr %s134, 4
      %s136 = scalar_lea.vmem %s2, %s135
      %s137 = smul.u32 4, %s13
      %p138 = scmp.lt.s32.totalorder %s137, 7
      %s139 = scalar_select %p138, %s137, 7
      %s140 = smul.addr %s139, 2
      %s141 = smul.addr %s140, 4
      %s142 = scalar_lea.vmem %s0, %s141
      %s143 = smul.u32 4, %s13
      %s144 = smul.u32 4, %s13
      %p145 = scmp.lt.s32.totalorder %s144, 7
      %s146 = scalar_select %p145, %s144, 7
      %s147 = smul.addr %s146, 4
      %s148 = scalar_lea.vmem %s2, %s147
      %s149 = smul.u32 4, %s13
      %v151 = vld [vmem:[%s142] sm:$0xff]
      %v152 = vld [vmem:[%s142 + $0x8] sm:$0xff]
      %v153 = vld [vmem:[%s142 + $0x10] sm:$0xff]
      %v154 = vld [vmem:[%s142 + $0x18] sm:$0xff]
      %v155 = vld [vmem:[%s1] sm:$0xff]
      %v156 = vld [vmem:[%s1 + $0x8] sm:$0xff]
      %v157 = vld [vmem:[%s1 + $0x10] sm:$0xff]
      %v158 = vld [vmem:[%s1 + $0x18] sm:$0xff]
      %v159 = vld [vmem:[%s1 + $0x20] sm:$0xff]
      %v160 = vld [vmem:[%s1 + $0x28] sm:$0xff]
      %v161 = vld [vmem:[%s1 + $0x30] sm:$0xff]
      %v162 = vld [vmem:[%s1 + $0x38] sm:$0xff]
      %v163 = vld [vmem:[%s1 + $0x40] sm:$0xff]
      %v164 = vld [vmem:[%s1 + $0x48] sm:$0xff]
      %v165 = vld [vmem:[%s1 + $0x50] sm:$0xff]
      %v166 = vld [vmem:[%s1 + $0x58] sm:$0xff]
      %v167 = vld [vmem:[%s1 + $0x60] sm:$0xff]
      %v168 = vld [vmem:[%s1 + $0x68] sm:$0xff]
      %v169 = vld [vmem:[%s1 + $0x70] sm:$0xff]
      %v170 = vld [vmem:[%s1 + $0x78] sm:$0xff]
      %v171 = vld [vmem:[%s1 + $0x80] sm:$0xff]
      %v172 = vld [vmem:[%s1 + $0x88] sm:$0xff]
      %v173 = vld [vmem:[%s1 + $0x90] sm:$0xff]
      %v174 = vld [vmem:[%s1 + $0x98] sm:$0xff]
      %v175 = vld [vmem:[%s1 + $0xa0] sm:$0xff]
      %v176 = vld [vmem:[%s1 + $0xa8] sm:$0xff]
      %v177 = vld [vmem:[%s1 + $0xb0] sm:$0xff]
      %v178 = vld [vmem:[%s1 + $0xb8] sm:$0xff]
      %v179 = vld [vmem:[%s1 + $0xc0] sm:$0xff]
      %v180 = vld [vmem:[%s1 + $0xc8] sm:$0xff]
      %v181 = vld [vmem:[%s1 + $0xd0] sm:$0xff]
      %v182 = vld [vmem:[%s1 + $0xd8] sm:$0xff]
      %v183 = vld [vmem:[%s1 + $0xe0] sm:$0xff]
      %v184 = vld [vmem:[%s1 + $0xe8] sm:$0xff]
      %v185 = vld [vmem:[%s1 + $0xf0] sm:$0xff]
      %v186 = vld [vmem:[%s1 + $0xf8] sm:$0xff]
      %v187 = vld [vmem:[%s1 + $0x100] sm:$0xff]
      %v188 = vld [vmem:[%s1 + $0x108] sm:$0xff]
      %v189 = vld [vmem:[%s1 + $0x110] sm:$0xff]
      %v190 = vld [vmem:[%s1 + $0x118] sm:$0xff]
      %v191 = vld [vmem:[%s1 + $0x120] sm:$0xff]
      %v192 = vld [vmem:[%s1 + $0x128] sm:$0xff]
      %v193 = vld [vmem:[%s1 + $0x130] sm:$0xff]
      %v194 = vld [vmem:[%s1 + $0x138] sm:$0xff]
      %v195 = vld [vmem:[%s1 + $0x140] sm:$0xff]
      %v196 = vld [vmem:[%s1 + $0x148] sm:$0xff]
      %v197 = vld [vmem:[%s1 + $0x150] sm:$0xff]
      %v198 = vld [vmem:[%s1 + $0x158] sm:$0xff]
      %v199 = vld [vmem:[%s1 + $0x160] sm:$0xff]
      %v200 = vld [vmem:[%s1 + $0x168] sm:$0xff]
      %v201 = vld [vmem:[%s1 + $0x170] sm:$0xff]
      %v202 = vld [vmem:[%s1 + $0x178] sm:$0xff]
      %v203 = vld [vmem:[%s1 + $0x180] sm:$0xff]
      %v204 = vld [vmem:[%s1 + $0x188] sm:$0xff]
      %v205 = vld [vmem:[%s1 + $0x190] sm:$0xff]
      %v206 = vld [vmem:[%s1 + $0x198] sm:$0xff]
      %v207 = vld [vmem:[%s1 + $0x1a0] sm:$0xff]
      %v208 = vld [vmem:[%s1 + $0x1a8] sm:$0xff]
      %v209 = vld [vmem:[%s1 + $0x1b0] sm:$0xff]
      %v210 = vld [vmem:[%s1 + $0x1b8] sm:$0xff]
      %v215 = vunpack.c.l.b16 %v151
      %v216 = vunpack.c.h.b16 %v151
      %v217 = vunpack.c.l.b16 %v152
      %v218 = vunpack.c.h.b16 %v152
      %v219 = vunpack.c.l.b16 %v153
      %v220 = vunpack.c.h.b16 %v153
      %v221 = vunpack.c.l.b16 %v154
      %v222 = vunpack.c.h.b16 %v154
      %v223 = vpack.c.b16 %v217, %v215
      %v224 = vpack.c.b16 %v218, %v216
      %v225 = vpack.c.b16 %v221, %v219
      %v226 = vpack.c.b16 %v222, %v220
      %v285 = vunpack.c.l.b16 %v155
      %v286 = vunpack.c.h.b16 %v155
      %v287 = vunpack.c.l.b16 %v156
      %v288 = vunpack.c.h.b16 %v156
      %v289 = vunpack.c.l.b16 %v157
      %v290 = vunpack.c.h.b16 %v157
      %v291 = vunpack.c.l.b16 %v158
      %v292 = vunpack.c.h.b16 %v158
      %v293 = vunpack.c.l.b16 %v159
      %v294 = vunpack.c.h.b16 %v159
      %v295 = vunpack.c.l.b16 %v160
      %v296 = vunpack.c.h.b16 %v160
      %v297 = vunpack.c.l.b16 %v161
      %v298 = vunpack.c.h.b16 %v161
      %v299 = vunpack.c.l.b16 %v162
      %v300 = vunpack.c.h.b16 %v162
      %v301 = vunpack.c.l.b16 %v163
      %v302 = vunpack.c.h.b16 %v163
      %v303 = vunpack.c.l.b16 %v164
      %v304 = vunpack.c.h.b16 %v164
      %v305 = vunpack.c.l.b16 %v165
      %v306 = vunpack.c.h.b16 %v165
      %v307 = vunpack.c.l.b16 %v166
      %v308 = vunpack.c.h.b16 %v166
      %v309 = vunpack.c.l.b16 %v167
      %v310 = vunpack.c.h.b16 %v167
      %v311 = vunpack.c.l.b16 %v168
      %v312 = vunpack.c.h.b16 %v168
      %v313 = vunpack.c.l.b16 %v169
      %v314 = vunpack.c.h.b16 %v169
      %v315 = vunpack.c.l.b16 %v170
      %v316 = vunpack.c.h.b16 %v170
      %v317 = vunpack.c.l.b16 %v171
      %v318 = vunpack.c.h.b16 %v171
      %v319 = vunpack.c.l.b16 %v172
      %v320 = vunpack.c.h.b16 %v172
      %v321 = vunpack.c.l.b16 %v173
      %v322 = vunpack.c.h.b16 %v173
      %v323 = vunpack.c.l.b16 %v174
      %v324 = vunpack.c.h.b16 %v174
      %v325 = vunpack.c.l.b16 %v175
      %v326 = vunpack.c.h.b16 %v175
      %v327 = vunpack.c.l.b16 %v176
      %v328 = vunpack.c.h.b16 %v176
      %v329 = vunpack.c.l.b16 %v177
      %v330 = vunpack.c.h.b16 %v177
      %v331 = vunpack.c.l.b16 %v178
      %v332 = vunpack.c.h.b16 %v178
      %v333 = vunpack.c.l.b16 %v179
      %v334 = vunpack.c.h.b16 %v179
      %v335 = vunpack.c.l.b16 %v180
      %v336 = vunpack.c.h.b16 %v180
      %v337 = vunpack.c.l.b16 %v181
      %v338 = vunpack.c.h.b16 %v181
      %v339 = vunpack.c.l.b16 %v182
      %v340 = vunpack.c.h.b16 %v182
      %v341 = vunpack.c.l.b16 %v183
      %v342 = vunpack.c.h.b16 %v183
      %v343 = vunpack.c.l.b16 %v184
      %v344 = vunpack.c.h.b16 %v184
      %v345 = vunpack.c.l.b16 %v185
      %v346 = vunpack.c.h.b16 %v185
      %v347 = vunpack.c.l.b16 %v186
      %v348 = vunpack.c.h.b16 %v186
      %v349 = vunpack.c.l.b16 %v187
      %v350 = vunpack.c.h.b16 %v187
      %v351 = vunpack.c.l.b16 %v188
      %v352 = vunpack.c.h.b16 %v188
      %v353 = vunpack.c.l.b16 %v189
      %v354 = vunpack.c.h.b16 %v189
      %v355 = vunpack.c.l.b16 %v190
      %v356 = vunpack.c.h.b16 %v190
      %v357 = vunpack.c.l.b16 %v191
      %v358 = vunpack.c.h.b16 %v191
      %v359 = vunpack.c.l.b16 %v192
      %v360 = vunpack.c.h.b16 %v192
      %v361 = vunpack.c.l.b16 %v193
      %v362 = vunpack.c.h.b16 %v193
      %v363 = vunpack.c.l.b16 %v194
      %v364 = vunpack.c.h.b16 %v194
      %v365 = vunpack.c.l.b16 %v195
      %v366 = vunpack.c.h.b16 %v195
      %v367 = vunpack.c.l.b16 %v196
      %v368 = vunpack.c.h.b16 %v196
      %v369 = vunpack.c.l.b16 %v197
      %v370 = vunpack.c.h.b16 %v197
      %v371 = vunpack.c.l.b16 %v198
      %v372 = vunpack.c.h.b16 %v198
      %v373 = vunpack.c.l.b16 %v199
      %v374 = vunpack.c.h.b16 %v199
      %v375 = vunpack.c.l.b16 %v200
      %v376 = vunpack.c.h.b16 %v200
      %v377 = vunpack.c.l.b16 %v201
      %v378 = vunpack.c.h.b16 %v201
      %v379 = vunpack.c.l.b16 %v202
      %v380 = vunpack.c.h.b16 %v202
      %v381 = vunpack.c.l.b16 %v203
      %v382 = vunpack.c.h.b16 %v203
      %v383 = vunpack.c.l.b16 %v204
      %v384 = vunpack.c.h.b16 %v204
      %v385 = vunpack.c.l.b16 %v205
      %v386 = vunpack.c.h.b16 %v205
      %v387 = vunpack.c.l.b16 %v206
      %v388 = vunpack.c.h.b16 %v206
      %v389 = vunpack.c.l.b16 %v207
      %v390 = vunpack.c.h.b16 %v207
      %v391 = vunpack.c.l.b16 %v208
      %v392 = vunpack.c.h.b16 %v208
      %v393 = vunpack.c.l.b16 %v209
      %v394 = vunpack.c.h.b16 %v209
      %v395 = vunpack.c.l.b16 %v210
      %v396 = vunpack.c.h.b16 %v210
      %v397 = vpack.c.b16 %v289, %v285
      %v398 = vpack.c.b16 %v290, %v286
      %v399 = vpack.c.b16 %v291, %v287
      %v400 = vpack.c.b16 %v292, %v288
      %v401 = vpack.c.b16 %v297, %v293
      %v402 = vpack.c.b16 %v298, %v294
      %v403 = vpack.c.b16 %v299, %v295
      %v404 = vpack.c.b16 %v300, %v296
      %v405 = vpack.c.b16 %v305, %v301
      %v406 = vpack.c.b16 %v306, %v302
      %v407 = vpack.c.b16 %v307, %v303
      %v408 = vpack.c.b16 %v308, %v304
      %v409 = vpack.c.b16 %v313, %v309
      %v410 = vpack.c.b16 %v314, %v310
      %v411 = vpack.c.b16 %v315, %v311
      %v412 = vpack.c.b16 %v316, %v312
      %v413 = vpack.c.b16 %v321, %v317
      %v414 = vpack.c.b16 %v322, %v318
      %v415 = vpack.c.b16 %v323, %v319
      %v416 = vpack.c.b16 %v324, %v320
      %v417 = vpack.c.b16 %v329, %v325
      %v418 = vpack.c.b16 %v330, %v326
      %v419 = vpack.c.b16 %v331, %v327
      %v420 = vpack.c.b16 %v332, %v328
      %v421 = vpack.c.b16 %v337, %v333
      %v422 = vpack.c.b16 %v338, %v334
      %v423 = vpack.c.b16 %v339, %v335
      %v424 = vpack.c.b16 %v340, %v336
      %v425 = vpack.c.b16 %v345, %v341
      %v426 = vpack.c.b16 %v346, %v342
      %v427 = vpack.c.b16 %v347, %v343
      %v428 = vpack.c.b16 %v348, %v344
      %v429 = vpack.c.b16 %v353, %v349
      %v430 = vpack.c.b16 %v354, %v350
      %v431 = vpack.c.b16 %v355, %v351
      %v432 = vpack.c.b16 %v356, %v352
      %v433 = vpack.c.b16 %v361, %v357
      %v434 = vpack.c.b16 %v362, %v358
      %v435 = vpack.c.b16 %v363, %v359
      %v436 = vpack.c.b16 %v364, %v360
      %v437 = vpack.c.b16 %v369, %v365
      %v438 = vpack.c.b16 %v370, %v366
      %v439 = vpack.c.b16 %v371, %v367
      %v440 = vpack.c.b16 %v372, %v368
      %v441 = vpack.c.b16 %v377, %v373
      %v442 = vpack.c.b16 %v378, %v374
      %v443 = vpack.c.b16 %v379, %v375
      %v444 = vpack.c.b16 %v380, %v376
      %v445 = vpack.c.b16 %v385, %v381
      %v446 = vpack.c.b16 %v386, %v382
      %v447 = vpack.c.b16 %v387, %v383
      %v448 = vpack.c.b16 %v388, %v384
      %v449 = vpack.c.b16 %v393, %v389
      %v450 = vpack.c.b16 %v394, %v390
      %v451 = vpack.c.b16 %v395, %v391
      %v452 = vpack.c.b16 %v396, %v392
      %vm509 = vcmask 785408
      %v511 = vsel %vm509, %v224, 0
      %v514 = vsel %vm509, %v226, 0
      %516 = vmatprep.subr.bf16.mxu0 %v398
      %517 = vmatpush1.bf16.msra.mxu0 %v397
      %518 = vmatprep.subr.bf16.mxu0 %v402
      %519 = vmatpush1.bf16.msra.mxu0 %v401
      %520 = vmatprep.subr.bf16.mxu0 %v406
      %521 = vmatpush1.bf16.msra.mxu0 %v405
      %522 = vmatprep.subr.bf16.mxu0 %v410
      %523 = vmatpush1.bf16.msra.mxu0 %v409
      %524 = vmatprep.subr.bf16.mxu0 %v414
      %525 = vmatpush1.bf16.msra.mxu0 %v413
      %526 = vmatprep.subr.bf16.mxu0 %v418
      %527 = vmatpush1.bf16.msra.mxu0 %v417
      %528 = vmatprep.subr.bf16.mxu0 %v422
      %529 = vmatpush1.bf16.msra.mxu0 %v421
      %530 = vmatprep.subr.bf16.mxu0 %v426
      %531 = vmatpush1.bf16.msra.mxu0 %v425
      %532 = vmatprep.subr.bf16.mxu0 %v430
      %533 = vmatpush1.bf16.msra.mxu0 %v429
      %534 = vmatprep.subr.bf16.mxu0 %v434
      %535 = vmatpush1.bf16.msra.mxu0 %v433
      %536 = vmatprep.subr.bf16.mxu0 %v438
      %537 = vmatpush1.bf16.msra.mxu0 %v437
      %538 = vmatprep.subr.bf16.mxu0 %v442
      %539 = vmatpush1.bf16.msra.mxu0 %v441
      %540 = vmatprep.subr.bf16.mxu0 %v446
      %541 = vmatpush1.bf16.msra.mxu0 %v445
      %542 = vmatprep.subr.bf16.mxu0 %v450
      %543 = vmatpush1.bf16.msra.mxu0 %v449
      %544 = vmatprep.subr.bf16.mxu0 0
      %545 = vmatpush1.bf16.msra.mxu0 0
      %546 = vmatprep.subr.bf16.mxu0 0
      %547 = vmatpush1.bf16.msra.mxu0 0
      %548 = vmatprep.mubr.bf16.mxu0 %v511
      %549 = vmatmul.mubr.bf16.gmra.mrb[0].mxu0 %v223
      %v550 = vpop.f32.mrb[0].mxu0
      %v551 = vadd.f32 0.0, %v550
      %v552 = vpop.f32.mrb[0].mxu0
      %v553 = vadd.f32 0.0, %v552
      %v554 = vpop.f32.mrb[0].mxu0
      %v555 = vadd.f32 0.0, %v554
      %v556 = vpop.f32.mrb[0].mxu0
      %v557 = vadd.f32 0.0, %v556
      %558 = vmatprep.mubr.bf16.mxu0 %v514
      %559 = vmatmul.mubr.bf16.gmra.mrb[0].mxu0 %v225
      %v560 = vpop.f32.mrb[0].mxu0
      %v561 = vadd.f32 0.0, %v560
      %v562 = vpop.f32.mrb[0].mxu0
      %v563 = vadd.f32 0.0, %v562
      %v564 = vpop.f32.mrb[0].mxu0
      %v565 = vadd.f32 0.0, %v564
      %v566 = vpop.f32.mrb[0].mxu0
      %v567 = vadd.f32 0.0, %v566
      %568 = vdwg.mxu0
      %569 = vmatprep.subr.bf16.mxu0 %v400
      %570 = vmatpush1.bf16.msra.mxu0 %v399
      %571 = vmatprep.subr.bf16.mxu0 %v404
      %572 = vmatpush1.bf16.msra.mxu0 %v403
      %573 = vmatprep.subr.bf16.mxu0 %v408
      %574 = vmatpush1.bf16.msra.mxu0 %v407
      %575 = vmatprep.subr.bf16.mxu0 %v412
      %576 = vmatpush1.bf16.msra.mxu0 %v411
      %577 = vmatprep.subr.bf16.mxu0 %v416
      %578 = vmatpush1.bf16.msra.mxu0 %v415
      %579 = vmatprep.subr.bf16.mxu0 %v420
      %580 = vmatpush1.bf16.msra.mxu0 %v419
      %581 = vmatprep.subr.bf16.mxu0 %v424
      %582 = vmatpush1.bf16.msra.mxu0 %v423
      %583 = vmatprep.subr.bf16.mxu0 %v428
      %584 = vmatpush1.bf16.msra.mxu0 %v427
      %585 = vmatprep.subr.bf16.mxu0 %v432
      %586 = vmatpush1.bf16.msra.mxu0 %v431
      %587 = vmatprep.subr.bf16.mxu0 %v436
      %588 = vmatpush1.bf16.msra.mxu0 %v435
      %589 = vmatprep.subr.bf16.mxu0 %v440
      %590 = vmatpush1.bf16.msra.mxu0 %v439
      %591 = vmatprep.subr.bf16.mxu0 %v444
      %592 = vmatpush1.bf16.msra.mxu0 %v443
      %593 = vmatprep.subr.bf16.mxu0 %v448
      %594 = vmatpush1.bf16.msra.mxu0 %v447
      %595 = vmatprep.subr.bf16.mxu0 %v452
      %596 = vmatpush1.bf16.msra.mxu0 %v451
      %597 = vmatprep.subr.bf16.mxu0 0
      %598 = vmatpush1.bf16.msra.mxu0 0
      %599 = vmatprep.subr.bf16.mxu0 0
      %600 = vmatpush1.bf16.msra.mxu0 0
      %601 = vmatprep.mubr.bf16.mxu0 %v511
      %602 = vmatmul.mubr.bf16.gmra.mrb[0].mxu0 %v223
      %v603 = vpop.f32.mrb[0].mxu0
      %v604 = vadd.f32 0.0, %v603
      %v605 = vpop.f32.mrb[0].mxu0
      %v606 = vadd.f32 0.0, %v605
      %v607 = vpop.f32.mrb[0].mxu0
      %v608 = vadd.f32 0.0, %v607
      %v609 = vpop.f32.mrb[0].mxu0
      %v610 = vadd.f32 0.0, %v609
      %611 = vmatprep.mubr.bf16.mxu0 %v514
      %612 = vmatmul.mubr.bf16.gmra.mrb[0].mxu0 %v225
      %v613 = vpop.f32.mrb[0].mxu0
      %v614 = vadd.f32 0.0, %v613
      %v615 = vpop.f32.mrb[0].mxu0
      %v616 = vadd.f32 0.0, %v615
      %v617 = vpop.f32.mrb[0].mxu0
      %v618 = vadd.f32 0.0, %v617
      %v619 = vpop.f32.mrb[0].mxu0
      %v620 = vadd.f32 0.0, %v619
      %621 = vdwg.mxu0
      %v622 = vtanh.pop %v551
      %v623 = vtanh.pop %v553
      %v624 = vtanh.pop %v604
      %v625 = vtanh.pop %v606
      %v626 = vtanh.pop %v555
      %v627 = vtanh.pop %v557
      %v628 = vtanh.pop %v608
      %v629 = vtanh.pop %v610
      %v630 = vtanh.pop %v561
      %v631 = vtanh.pop %v563
      %v632 = vtanh.pop %v614
      %v633 = vtanh.pop %v616
      %v634 = vtanh.pop %v565
      %v635 = vtanh.pop %v567
      %v636 = vtanh.pop %v618
      %v637 = vtanh.pop %v620
      %v638 = vadd.f32 %v622, %v623
      %v639 = vadd.f32 %v626, %v627
      %v640 = vadd.f32 %v630, %v631
      %v641 = vadd.f32 %v634, %v635
      %v642 = vadd.f32 %v638, %v624
      %v643 = vadd.f32 %v639, %v628
      %v644 = vadd.f32 %v640, %v632
      %v645 = vadd.f32 %v641, %v636
      %v646 = vadd.f32 %v642, %v625
      %v647 = vadd.f32 %v643, %v629
      %v648 = vadd.f32 %v644, %v633
      %v649 = vadd.f32 %v645, %v637
      %v650 = vmul.f32 %v646, 0.25
      %v651 = vmul.f32 %v647, 0.25
      %v652 = vmul.f32 %v648, 0.25
      %v653 = vmul.f32 %v649, 0.25
      %v654 = vpack.c.bf16 %v651, %v650
      %v655 = vpack.c.bf16 %v653, %v652
      %v658 = vunpack.c.l.b16 %v654
      %v659 = vunpack.c.h.b16 %v654
      %v660 = vunpack.c.l.b16 %v655
      %v661 = vunpack.c.h.b16 %v655
      %v662 = vpack.c.b16 %v658, %v658
      %v663 = vpack.c.b16 %v659, %v659
      %v664 = vpack.c.b16 %v660, %v660
      %v665 = vpack.c.b16 %v661, %v661
      %670 = vst [vmem:[%s148] sm:$0xf] %v662
      %671 = vst [vmem:[%s148 + $0x4] sm:$0xf] %v663
      %672 = vst [vmem:[%s148 + $0x8] sm:$0xf] %v664
      %673 = vst [vmem:[%s148 + $0xc] sm:$0xf] %v665
      %s674 = smul.u32 4, %s13
      %p675 = scmp.lt.s32.totalorder %s674, 7
      %s676 = scalar_select %p675, %s674, 7
      %s677 = smul.addr %s676, 4
      %s678 = scalar_lea.vmem %s2, %s677
      // Predicated region
      $region29: #{lenet5_forward.4} parent=27 // pred_check
        %p679 = pneg %p78
      $region30: #{lenet5_forward.4} parent=27 // pred_check_branch
        %681 = sbr.rel (%p679) target = $region32
      $region31: #{lenet5_forward.4} parent=27 // pred_region
        %s682 = smul.u32 4, %s13
      $region32: #{lenet5_forward.4} parent=27 // pred_fallthru
        _
    $region28: #{lenet5_forward.4} parent=5 // pred_fallthru
      _
    %p683 = scmp.le.s32.totalorder 2, %s8
    // Predicated region
    $region33: #{lenet5_forward.4} parent=5 // pred_check
      %p684 = pneg %p683
    $region34: #{lenet5_forward.4} parent=5 // pred_check_branch
      %686 = sbr.rel (%p684) target = $region36
    $region35: #{lenet5_forward.4} parent=5 // pred_region
      %s687 = ssub.s32 %s8, 2
      // Predicated region
      $region37: #{lenet5_forward.4} parent=35 // pred_check
        %p688 = pneg %p84
      $region38: #{lenet5_forward.4} parent=35 // pred_check_branch
        %690 = sbr.rel (%p688) target = $region40
      $region39: #{lenet5_forward.4} parent=35 // pred_region
        %s691 = smul.u32 4, %s14
        %p692 = scmp.lt.s32.totalorder %s691, 7
        %s693 = scalar_select %p692, %s691, 7
        %s694 = smul.addr %s693, 4
        %s695 = scalar_lea.vmem %s2, %s694
      $region40: #{lenet5_forward.4} parent=35 // pred_fallthru
        _
    $region36: #{lenet5_forward.4} parent=5 // pred_fallthru
      _
  $region6: #{lenet5_forward.4} parent=0 // loop_footer
    %s12 = sadd.s32 1, %s8
  $region7: #{lenet5_forward.4} parent=0 // loop_footer_branch
    %7 = sbr.rel target = $region3
  $region8: #{lenet5_forward.4} parent=0 // loop_exit
    _

// kernel: lenet5_forward.5
$region0: #{lenet5_forward.5}
  #allocation0 [shape = 'u32[]', space=smem, size = 0x4, offset = 0x4, fixed_abs, tag = 'smem constant byte address 0x4 - core index']
  #allocation1 [shape = 'u32[144,128]{1,0:T(1,128)}', space=vmem, size = 0x12000, scoped, tag = 'internal scratch']
  %s0 = inlined_call_operand.vmem [shape: bf16[16,416], index: 0, kind: input, shape index: {}]
  %s1 = inlined_call_operand.vmem [shape: bf16[416,128], index: 1, kind: input, shape index: {}]
  %s2 = inlined_call_operand.vmem [shape: bf16[128,128], index: 2, kind: input, shape index: {}]
  %s3 = inlined_call_operand.vmem [shape: f32[1,128], index: 3, kind: input, shape index: {}]
  %s4 = inlined_call_operand.vmem [shape: bf16[128,128], index: 4, kind: input, shape index: {}]
  %s5 = inlined_call_operand.vmem [shape: f32[1,128], index: 5, kind: input, shape index: {}]
  %s6 = inlined_call_operand.vmem [shape: f32[16,128], index: 6, kind: output, shape index: {}]
  %s7 = sld [smem:[#allocation0]]
  $region34: #{lenet5_forward.5} parent=0
    _
  %s9 = ssub.s32 1, %s7
  %s10 = scalar_select 0, %s9, %s7
  // Predicated region
  $region2: #{lenet5_forward.5} parent=0 // pred_check
    _
  $region3: #{lenet5_forward.5} parent=0 // pred_check_branch
    %12 = sbr.rel (0) target = $region5
  $region4: #{lenet5_forward.5} parent=0 // pred_region
    _
  $region5: #{lenet5_forward.5} parent=0 // pred_fallthru
    _
  // Predicated region
  $region6: #{lenet5_forward.5} parent=0 // pred_check
    _
  $region7: #{lenet5_forward.5} parent=0 // pred_check_branch
    %14 = sbr.rel (0) target = $region9
  $region8: #{lenet5_forward.5} parent=0 // pred_region
    _
  $region9: #{lenet5_forward.5} parent=0 // pred_fallthru
    _
  // Predicated region
  $region10: #{lenet5_forward.5} parent=0 // pred_check
    _
  $region11: #{lenet5_forward.5} parent=0 // pred_check_branch
    %16 = sbr.rel (0) target = $region13
  $region12: #{lenet5_forward.5} parent=0 // pred_region
    _
  $region13: #{lenet5_forward.5} parent=0 // pred_fallthru
    _
  // Predicated region
  $region14: #{lenet5_forward.5} parent=0 // pred_check
    _
  $region15: #{lenet5_forward.5} parent=0 // pred_check_branch
    %18 = sbr.rel (0) target = $region17
  $region16: #{lenet5_forward.5} parent=0 // pred_region
    _
  $region17: #{lenet5_forward.5} parent=0 // pred_fallthru
    _
  // Predicated region
  $region18: #{lenet5_forward.5} parent=0 // pred_check
    _
  $region19: #{lenet5_forward.5} parent=0 // pred_check_branch
    %20 = sbr.rel (0) target = $region21
  $region20: #{lenet5_forward.5} parent=0 // pred_region
    _
  $region21: #{lenet5_forward.5} parent=0 // pred_fallthru
    _
  // Predicated region
  $region22: #{lenet5_forward.5} parent=0 // pred_check
    _
  $region23: #{lenet5_forward.5} parent=0 // pred_check_branch
    %22 = sbr.rel (0) target = $region25
  $region24: #{lenet5_forward.5} parent=0 // pred_region
    _
  $region25: #{lenet5_forward.5} parent=0 // pred_fallthru
    _
  %v24 = vld [vmem:[%s0] sm:$0xff]
  %v25 = vld [vmem:[%s0 + $0x8] sm:$0xff]
  %v26 = vld [vmem:[%s0 + $0x10] sm:$0xff]
  %v27 = vld [vmem:[%s0 + $0x18] sm:$0xff]
  %v28 = vld [vmem:[%s1] sm:$0xf]
  %v29 = vld [vmem:[%s1 + $0x4] sm:$0xf]
  %v30 = vld [vmem:[%s1 + $0x8] sm:$0xf]
  %v31 = vld [vmem:[%s1 + $0xc] sm:$0xf]
  %v32 = vld [vmem:[%s1 + $0x10] sm:$0xf]
  %v33 = vld [vmem:[%s1 + $0x14] sm:$0xf]
  %v34 = vld [vmem:[%s1 + $0x18] sm:$0xf]
  %v35 = vld [vmem:[%s1 + $0x1c] sm:$0xf]
  %v36 = vld [vmem:[%s1 + $0x20] sm:$0xf]
  %v37 = vld [vmem:[%s1 + $0x24] sm:$0xf]
  %v38 = vld [vmem:[%s1 + $0x28] sm:$0xf]
  %v39 = vld [vmem:[%s1 + $0x2c] sm:$0xf]
  %v40 = vld [vmem:[%s1 + $0x30] sm:$0xf]
  %v41 = vld [vmem:[%s1 + $0x34] sm:$0xf]
  %v42 = vld [vmem:[%s1 + $0x38] sm:$0xf]
  %v43 = vld [vmem:[%s1 + $0x3c] sm:$0xf]
  %v44 = vld [vmem:[%s1 + $0x40] sm:$0xf]
  %v45 = vld [vmem:[%s1 + $0x44] sm:$0xf]
  %v46 = vld [vmem:[%s1 + $0x48] sm:$0xf]
  %v47 = vld [vmem:[%s1 + $0x4c] sm:$0xf]
  %v48 = vld [vmem:[%s1 + $0x50] sm:$0xf]
  %v49 = vld [vmem:[%s1 + $0x54] sm:$0xf]
  %v50 = vld [vmem:[%s1 + $0x58] sm:$0xf]
  %v51 = vld [vmem:[%s1 + $0x5c] sm:$0xf]
  %v52 = vld [vmem:[%s1 + $0x60] sm:$0xf]
  %v53 = vld [vmem:[%s1 + $0x64] sm:$0xf]
  %v54 = vld [vmem:[%s1 + $0x68] sm:$0xf]
  %v55 = vld [vmem:[%s1 + $0x6c] sm:$0xf]
  %v56 = vld [vmem:[%s1 + $0x70] sm:$0xf]
  %v57 = vld [vmem:[%s1 + $0x74] sm:$0xf]
  %v58 = vld [vmem:[%s1 + $0x78] sm:$0xf]
  %v59 = vld [vmem:[%s1 + $0x7c] sm:$0xf]
  %v60 = vld [vmem:[%s1 + $0x80] sm:$0xf]
  %v61 = vld [vmem:[%s1 + $0x84] sm:$0xf]
  %v62 = vld [vmem:[%s1 + $0x88] sm:$0xf]
  %v63 = vld [vmem:[%s1 + $0x8c] sm:$0xf]
  %v64 = vld [vmem:[%s1 + $0x90] sm:$0xf]
  %v65 = vld [vmem:[%s1 + $0x94] sm:$0xf]
  %v66 = vld [vmem:[%s1 + $0x98] sm:$0xf]
  %v67 = vld [vmem:[%s1 + $0x9c] sm:$0xf]
  %v68 = vld [vmem:[%s1 + $0xa0] sm:$0xf]
  %v69 = vld [vmem:[%s1 + $0xa4] sm:$0xf]
  %v70 = vld [vmem:[%s1 + $0xa8] sm:$0xf]
  %v71 = vld [vmem:[%s1 + $0xac] sm:$0xf]
  %v72 = vld [vmem:[%s1 + $0xb0] sm:$0xf]
  %v73 = vld [vmem:[%s1 + $0xb4] sm:$0xf]
  %v74 = vld [vmem:[%s1 + $0xb8] sm:$0xf]
  %v75 = vld [vmem:[%s1 + $0xbc] sm:$0xf]
  %v76 = vld [vmem:[%s1 + $0xc0] sm:$0xf]
  %v77 = vld [vmem:[%s1 + $0xc4] sm:$0xf]
  %v78 = vld [vmem:[%s1 + $0xc8] sm:$0xf]
  %v79 = vld [vmem:[%s1 + $0xcc] sm:$0xf]
  %v84 = vunpack.c.l.b16 %v24
  %v85 = vunpack.c.h.b16 %v24
  %v86 = vunpack.c.l.b16 %v25
  %v87 = vunpack.c.h.b16 %v25
  %v88 = vunpack.c.l.b16 %v26
  %v89 = vunpack.c.h.b16 %v26
  %v90 = vunpack.c.l.b16 %v27
  %v91 = vunpack.c.h.b16 %v27
  %v92 = vpack.c.b16 %v88, %v84
  %v93 = vpack.c.b16 %v89, %v85
  %v94 = vpack.c.b16 %v90, %v86
  %v95 = vpack.c.b16 %v91, %v87
  %v151 = vunpack.c.l.b16 %v28
  %v152 = vunpack.c.l.b16 %v29
  %v153 = vunpack.c.l.b16 %v30
  %v154 = vunpack.c.l.b16 %v31
  %v155 = vunpack.c.l.b16 %v32
  %v156 = vunpack.c.l.b16 %v33
  %v157 = vunpack.c.l.b16 %v34
  %v158 = vunpack.c.l.b16 %v35
  %v159 = vunpack.c.l.b16 %v36
  %v160 = vunpack.c.l.b16 %v37
  %v161 = vunpack.c.l.b16 %v38
  %v162 = vunpack.c.l.b16 %v39
  %v163 = vunpack.c.l.b16 %v40
  %v164 = vunpack.c.l.b16 %v41
  %v165 = vunpack.c.l.b16 %v42
  %v166 = vunpack.c.l.b16 %v43
  %v167 = vunpack.c.l.b16 %v44
  %v168 = vunpack.c.l.b16 %v45
  %v169 = vunpack.c.l.b16 %v46
  %v170 = vunpack.c.l.b16 %v47
  %v171 = vunpack.c.l.b16 %v48
  %v172 = vunpack.c.l.b16 %v49
  %v173 = vunpack.c.l.b16 %v50
  %v174 = vunpack.c.l.b16 %v51
  %v175 = vunpack.c.l.b16 %v52
  %v176 = vunpack.c.l.b16 %v53
  %v177 = vunpack.c.l.b16 %v54
  %v178 = vunpack.c.l.b16 %v55
  %v179 = vunpack.c.l.b16 %v56
  %v180 = vunpack.c.l.b16 %v57
  %v181 = vunpack.c.l.b16 %v58
  %v182 = vunpack.c.l.b16 %v59
  %v183 = vunpack.c.l.b16 %v60
  %v184 = vunpack.c.l.b16 %v61
  %v185 = vunpack.c.l.b16 %v62
  %v186 = vunpack.c.l.b16 %v63
  %v187 = vunpack.c.l.b16 %v64
  %v188 = vunpack.c.l.b16 %v65
  %v189 = vunpack.c.l.b16 %v66
  %v190 = vunpack.c.l.b16 %v67
  %v191 = vunpack.c.l.b16 %v68
  %v192 = vunpack.c.l.b16 %v69
  %v193 = vunpack.c.l.b16 %v70
  %v194 = vunpack.c.l.b16 %v71
  %v195 = vunpack.c.l.b16 %v72
  %v196 = vunpack.c.l.b16 %v73
  %v197 = vunpack.c.l.b16 %v74
  %v198 = vunpack.c.l.b16 %v75
  %v199 = vunpack.c.l.b16 %v76
  %v200 = vunpack.c.l.b16 %v77
  %v201 = vunpack.c.l.b16 %v78
  %v202 = vunpack.c.l.b16 %v79
  %v203 = vpack.c.b16 %v152, %v151
  %v204 = vpack.c.b16 %v154, %v153
  %v205 = vpack.c.b16 %v156, %v155
  %v206 = vpack.c.b16 %v158, %v157
  %v207 = vpack.c.b16 %v160, %v159
  %v208 = vpack.c.b16 %v162, %v161
  %v209 = vpack.c.b16 %v164, %v163
  %v210 = vpack.c.b16 %v166, %v165
  %v211 = vpack.c.b16 %v168, %v167
  %v212 = vpack.c.b16 %v170, %v169
  %v213 = vpack.c.b16 %v172, %v171
  %v214 = vpack.c.b16 %v174, %v173
  %v215 = vpack.c.b16 %v176, %v175
  %v216 = vpack.c.b16 %v178, %v177
  %v217 = vpack.c.b16 %v180, %v179
  %v218 = vpack.c.b16 %v182, %v181
  %v219 = vpack.c.b16 %v184, %v183
  %v220 = vpack.c.b16 %v186, %v185
  %v221 = vpack.c.b16 %v188, %v187
  %v222 = vpack.c.b16 %v190, %v189
  %v223 = vpack.c.b16 %v192, %v191
  %v224 = vpack.c.b16 %v194, %v193
  %v225 = vpack.c.b16 %v196, %v195
  %v226 = vpack.c.b16 %v198, %v197
  %v227 = vpack.c.b16 %v200, %v199
  %v228 = vpack.c.b16 %v202, %v201
  %vm255 = vcmask 261120
  %v257 = vsel %vm255, %v95, 0
  %259 = vmatprep.subr.bf16.mxu0 0
  %260 = vmatpush1.bf16.msra.mxu0 %v203
  %261 = vmatprep.subr.bf16.mxu0 0
  %262 = vmatpush1.bf16.msra.mxu0 %v204
  %263 = vmatprep.subr.bf16.mxu0 0
  %264 = vmatpush1.bf16.msra.mxu0 %v205
  %265 = vmatprep.subr.bf16.mxu0 0
  %266 = vmatpush1.bf16.msra.mxu0 %v206
  %267 = vmatprep.subr.bf16.mxu0 0
  %268 = vmatpush1.bf16.msra.mxu0 %v207
  %269 = vmatprep.subr.bf16.mxu0 0
  %270 = vmatpush1.bf16.msra.mxu0 %v208
  %271 = vmatprep.subr.bf16.mxu0 0
  %272 = vmatpush1.bf16.msra.mxu0 %v209
  %273 = vmatprep.subr.bf16.mxu0 0
  %274 = vmatpush1.bf16.msra.mxu0 %v210
  %275 = vmatprep.subr.bf16.mxu0 0
  %276 = vmatpush1.bf16.msra.mxu0 %v211
  %277 = vmatprep.subr.bf16.mxu0 0
  %278 = vmatpush1.bf16.msra.mxu0 %v212
  %279 = vmatprep.subr.bf16.mxu0 0
  %280 = vmatpush1.bf16.msra.mxu0 %v213
  %281 = vmatprep.subr.bf16.mxu0 0
  %282 = vmatpush1.bf16.msra.mxu0 %v214
  %283 = vmatprep.subr.bf16.mxu0 0
  %284 = vmatpush1.bf16.msra.mxu0 %v215
  %285 = vmatprep.subr.bf16.mxu0 0
  %286 = vmatpush1.bf16.msra.mxu0 %v216
  %287 = vmatprep.subr.bf16.mxu0 0
  %288 = vmatpush1.bf16.msra.mxu0 %v217
  %289 = vmatprep.subr.bf16.mxu0 0
  %290 = vmatpush1.bf16.msra.mxu0 %v218
  %291 = vmatprep.mubr.bf16.mxu0 %v93
  %292 = vmatmul.mubr.bf16.gmra.mrb[0].mxu0 %v92
  %v293 = vpop.f32.mrb[0].mxu0
  %v294 = vadd.f32 0.0, %v293
  %v295 = vpop.f32.mrb[0].mxu0
  %v296 = vpop.f32.mrb[0].mxu0
  %v297 = vadd.f32 0.0, %v296
  %v298 = vpop.f32.mrb[0].mxu0
  %299 = vdwg.mxu0
  %300 = vmatprep.subr.bf16.mxu0 0
  %301 = vmatpush1.bf16.msra.mxu0 %v219
  %302 = vmatprep.subr.bf16.mxu0 0
  %303 = vmatpush1.bf16.msra.mxu0 %v220
  %304 = vmatprep.subr.bf16.mxu0 0
  %305 = vmatpush1.bf16.msra.mxu0 %v221
  %306 = vmatprep.subr.bf16.mxu0 0
  %307 = vmatpush1.bf16.msra.mxu0 %v222
  %308 = vmatprep.subr.bf16.mxu0 0
  %309 = vmatpush1.bf16.msra.mxu0 %v223
  %310 = vmatprep.subr.bf16.mxu0 0
  %311 = vmatpush1.bf16.msra.mxu0 %v224
  %312 = vmatprep.subr.bf16.mxu0 0
  %313 = vmatpush1.bf16.msra.mxu0 %v225
  %314 = vmatprep.subr.bf16.mxu0 0
  %315 = vmatpush1.bf16.msra.mxu0 %v226
  %316 = vmatprep.subr.bf16.mxu0 0
  %317 = vmatpush1.bf16.msra.mxu0 %v227
  %318 = vmatprep.subr.bf16.mxu0 0
  %319 = vmatpush1.bf16.msra.mxu0 %v228
  %320 = vmatprep.subr.bf16.mxu0 0
  %321 = vmatpush1.bf16.msra.mxu0 0
  %322 = vmatprep.subr.bf16.mxu0 0
  %323 = vmatpush1.bf16.msra.mxu0 0
  %324 = vmatprep.subr.bf16.mxu0 0
  %325 = vmatpush1.bf16.msra.mxu0 0
  %326 = vmatprep.subr.bf16.mxu0 0
  %327 = vmatpush1.bf16.msra.mxu0 0
  %328 = vmatprep.subr.bf16.mxu0 0
  %329 = vmatpush1.bf16.msra.mxu0 0
  %330 = vmatprep.subr.bf16.mxu0 0
  %331 = vmatpush1.bf16.msra.mxu0 0
  %332 = vmatprep.mubr.bf16.mxu0 %v257
  %333 = vmatmul.mubr.bf16.gmra.mrb[0].mxu0 %v94
  %v334 = vpop.f32.mrb[0].mxu0
  %v335 = vadd.f32 %v294, %v334
  %v336 = vpop.f32.mrb[0].mxu0
  %v337 = vpop.f32.mrb[0].mxu0
  %v338 = vadd.f32 %v297, %v337
  %v339 = vpop.f32.mrb[0].mxu0
  %340 = vdwg.mxu0
  %v341 = vtanh.pop %v335
  %v342 = vtanh.pop %v338
  %v343 = vpack.c.bf16 %v342, %v341
  %v344 = vld [vmem:[%s2] sm:$0xf]
  %v345 = vld [vmem:[%s2 + $0x4] sm:$0xf]
  %v346 = vld [vmem:[%s2 + $0x8] sm:$0xf]
  %v347 = vld [vmem:[%s2 + $0xc] sm:$0xf]
  %v348 = vld [vmem:[%s2 + $0x10] sm:$0xf]
  %v349 = vld [vmem:[%s2 + $0x14] sm:$0xf]
  %v350 = vld [vmem:[%s2 + $0x18] sm:$0xf]
  %v351 = vld [vmem:[%s2 + $0x1c] sm:$0xf]
  %v352 = vld [vmem:[%s2 + $0x20] sm:$0xf]
  %v353 = vld [vmem:[%s2 + $0x24] sm:$0xf]
  %v354 = vld [vmem:[%s2 + $0x28] sm:$0xf]
  %v355 = vld [vmem:[%s2 + $0x2c] sm:$0xf]
  %v356 = vld [vmem:[%s2 + $0x30] sm:$0xf]
  %v357 = vld [vmem:[%s2 + $0x34] sm:$0xf]
  %v358 = vld [vmem:[%s2 + $0x38] sm:$0xf]
  %v359 = vld [vmem:[%s2 + $0x3c] sm:$0xf]
  %v360 = vld [vmem:[%s3] sm:$0x1]
  %v362 = vlaneseq
  %v363 = vshrl.u32 %v362, 7
  %v364 = vsub.s32 0, %v363
  %v365 = vrot.slane %v360, %v364
  %v383 = vunpack.c.l.b16 %v344
  %v384 = vunpack.c.l.b16 %v345
  %v385 = vunpack.c.l.b16 %v346
  %v386 = vunpack.c.l.b16 %v347
  %v387 = vunpack.c.l.b16 %v348
  %v388 = vunpack.c.l.b16 %v349
  %v389 = vunpack.c.l.b16 %v350
  %v390 = vunpack.c.l.b16 %v351
  %v391 = vunpack.c.l.b16 %v352
  %v392 = vunpack.c.l.b16 %v353
  %v393 = vunpack.c.l.b16 %v354
  %v394 = vunpack.c.l.b16 %v355
  %v395 = vunpack.c.l.b16 %v356
  %v396 = vunpack.c.l.b16 %v357
  %v397 = vunpack.c.l.b16 %v358
  %v398 = vunpack.c.l.b16 %v359
  %v399 = vpack.c.b16 %v384, %v383
  %v400 = vpack.c.b16 %v386, %v385
  %v401 = vpack.c.b16 %v388, %v387
  %v402 = vpack.c.b16 %v390, %v389
  %v403 = vpack.c.b16 %v392, %v391
  %v404 = vpack.c.b16 %v394, %v393
  %v405 = vpack.c.b16 %v396, %v395
  %v406 = vpack.c.b16 %v398, %v397
  %415 = vmatprep.subr.bf16.mxu0 0
  %416 = vmatpush1.bf16.msra.mxu0 %v399
  %417 = vmatprep.subr.bf16.mxu0 0
  %418 = vmatpush1.bf16.msra.mxu0 %v400
  %419 = vmatprep.subr.bf16.mxu0 0
  %420 = vmatpush1.bf16.msra.mxu0 %v401
  %421 = vmatprep.subr.bf16.mxu0 0
  %422 = vmatpush1.bf16.msra.mxu0 %v402
  %423 = vmatprep.subr.bf16.mxu0 0
  %424 = vmatpush1.bf16.msra.mxu0 %v403
  %425 = vmatprep.subr.bf16.mxu0 0
  %426 = vmatpush1.bf16.msra.mxu0 %v404
  %427 = vmatprep.subr.bf16.mxu0 0
  %428 = vmatpush1.bf16.msra.mxu0 %v405
  %429 = vmatprep.subr.bf16.mxu0 0
  %430 = vmatpush1.bf16.msra.mxu0 %v406
  %431 = vmatprep.subr.bf16.mxu0 0
  %432 = vmatpush1.bf16.msra.mxu0 0
  %433 = vmatprep.subr.bf16.mxu0 0
  %434 = vmatpush1.bf16.msra.mxu0 0
  %435 = vmatprep.subr.bf16.mxu0 0
  %436 = vmatpush1.bf16.msra.mxu0 0
  %437 = vmatprep.subr.bf16.mxu0 0
  %438 = vmatpush1.bf16.msra.mxu0 0
  %439 = vmatprep.subr.bf16.mxu0 0
  %440 = vmatpush1.bf16.msra.mxu0 0
  %441 = vmatprep.subr.bf16.mxu0 0
  %442 = vmatpush1.bf16.msra.mxu0 0
  %443 = vmatprep.subr.bf16.mxu0 0
  %444 = vmatpush1.bf16.msra.mxu0 0
  %445 = vmatprep.subr.bf16.mxu0 0
  %446 = vmatpush1.bf16.msra.mxu0 0
  %447 = vmatprep.mubr.bf16.mxu0 0
  %448 = vmatmul.mubr.bf16.gmra.mrb[0].mxu0 %v343
  %v449 = vpop.f32.mrb[0].mxu0
  %v450 = vadd.f32 %v365, %v449
  %v451 = vpop.f32.mrb[0].mxu0
  %v452 = vpop.f32.mrb[0].mxu0
  %v453 = vadd.f32 %v365, %v452
  %v454 = vpop.f32.mrb[0].mxu0
  %455 = vdwg.mxu0
  %v456 = vtanh.pop %v450
  %v457 = vtanh.pop %v453
  %v458 = vpack.c.bf16 %v457, %v456
  %v459 = vld [vmem:[%s4] sm:$0xf]
  %v460 = vld [vmem:[%s4 + $0x4] sm:$0xf]
  %v461 = vld [vmem:[%s4 + $0x8] sm:$0xf]
  %v462 = vld [vmem:[%s4 + $0xc] sm:$0xf]
  %v463 = vld [vmem:[%s4 + $0x10] sm:$0xf]
  %v464 = vld [vmem:[%s4 + $0x14] sm:$0xf]
  %v465 = vld [vmem:[%s4 + $0x18] sm:$0xf]
  %v466 = vld [vmem:[%s4 + $0x1c] sm:$0xf]
  %v467 = vld [vmem:[%s4 + $0x20] sm:$0xf]
  %v468 = vld [vmem:[%s4 + $0x24] sm:$0xf]
  %v469 = vld [vmem:[%s4 + $0x28] sm:$0xf]
  %v470 = vld [vmem:[%s4 + $0x2c] sm:$0xf]
  %v471 = vld [vmem:[%s4 + $0x30] sm:$0xf]
  %v472 = vld [vmem:[%s4 + $0x34] sm:$0xf]
  %v473 = vld [vmem:[%s4 + $0x38] sm:$0xf]
  %v474 = vld [vmem:[%s4 + $0x3c] sm:$0xf]
  %v475 = vld [vmem:[%s5] sm:$0x1]
  %v477 = vlaneseq
  %v478 = vshrl.u32 %v477, 7
  %v479 = vsub.s32 0, %v478
  %v480 = vrot.slane %v475, %v479
  %v498 = vunpack.c.l.b16 %v459
  %v499 = vunpack.c.l.b16 %v460
  %v500 = vunpack.c.l.b16 %v461
  %v501 = vunpack.c.l.b16 %v462
  %v502 = vunpack.c.l.b16 %v463
  %v503 = vunpack.c.l.b16 %v464
  %v504 = vunpack.c.l.b16 %v465
  %v505 = vunpack.c.l.b16 %v466
  %v506 = vunpack.c.l.b16 %v467
  %v507 = vunpack.c.l.b16 %v468
  %v508 = vunpack.c.l.b16 %v469
  %v509 = vunpack.c.l.b16 %v470
  %v510 = vunpack.c.l.b16 %v471
  %v511 = vunpack.c.l.b16 %v472
  %v512 = vunpack.c.l.b16 %v473
  %v513 = vunpack.c.l.b16 %v474
  %v514 = vpack.c.b16 %v499, %v498
  %v515 = vpack.c.b16 %v501, %v500
  %v516 = vpack.c.b16 %v503, %v502
  %v517 = vpack.c.b16 %v505, %v504
  %v518 = vpack.c.b16 %v507, %v506
  %v519 = vpack.c.b16 %v509, %v508
  %v520 = vpack.c.b16 %v511, %v510
  %v521 = vpack.c.b16 %v513, %v512
  %530 = vmatprep.subr.bf16.mxu0 0
  %531 = vmatpush1.bf16.msra.mxu0 %v514
  %532 = vmatprep.subr.bf16.mxu0 0
  %533 = vmatpush1.bf16.msra.mxu0 %v515
  %534 = vmatprep.subr.bf16.mxu0 0
  %535 = vmatpush1.bf16.msra.mxu0 %v516
  %536 = vmatprep.subr.bf16.mxu0 0
  %537 = vmatpush1.bf16.msra.mxu0 %v517
  %538 = vmatprep.subr.bf16.mxu0 0
  %539 = vmatpush1.bf16.msra.mxu0 %v518
  %540 = vmatprep.subr.bf16.mxu0 0
  %541 = vmatpush1.bf16.msra.mxu0 %v519
  %542 = vmatprep.subr.bf16.mxu0 0
  %543 = vmatpush1.bf16.msra.mxu0 %v520
  %544 = vmatprep.subr.bf16.mxu0 0
  %545 = vmatpush1.bf16.msra.mxu0 %v521
  %546 = vmatprep.subr.bf16.mxu0 0
  %547 = vmatpush1.bf16.msra.mxu0 0
  %548 = vmatprep.subr.bf16.mxu0 0
  %549 = vmatpush1.bf16.msra.mxu0 0
  %550 = vmatprep.subr.bf16.mxu0 0
  %551 = vmatpush1.bf16.msra.mxu0 0
  %552 = vmatprep.subr.bf16.mxu0 0
  %553 = vmatpush1.bf16.msra.mxu0 0
  %554 = vmatprep.subr.bf16.mxu0 0
  %555 = vmatpush1.bf16.msra.mxu0 0
  %556 = vmatprep.subr.bf16.mxu0 0
  %557 = vmatpush1.bf16.msra.mxu0 0
  %558 = vmatprep.subr.bf16.mxu0 0
  %559 = vmatpush1.bf16.msra.mxu0 0
  %560 = vmatprep.subr.bf16.mxu0 0
  %561 = vmatpush1.bf16.msra.mxu0 0
  %562 = vmatprep.mubr.bf16.mxu0 0
  %563 = vmatmul.mubr.bf16.gmra.mrb[0].mxu0 %v458
  %v564 = vpop.f32.mrb[0].mxu0
  %v565 = vadd.f32 %v480, %v564
  %v566 = vpop.f32.mrb[0].mxu0
  %v567 = vpop.f32.mrb[0].mxu0
  %v568 = vadd.f32 %v480, %v567
  %v569 = vpop.f32.mrb[0].mxu0
  %570 = vdwg.mxu0
  %571 = vst [vmem:[%s6] sm:$0xff] %v565
  %572 = vst [vmem:[%s6 + $0x8] sm:$0xff] %v568
  // Predicated region
  $region26: #{lenet5_forward.5} parent=0 // pred_check
    _
  $region27: #{lenet5_forward.5} parent=0 // pred_check_branch
    %574 = sbr.rel (0) target = $region29
  $region28: #{lenet5_forward.5} parent=0 // pred_region
    _
  $region29: #{lenet5_forward.5} parent=0 // pred_fallthru
    _
  // Predicated region
  $region30: #{lenet5_forward.5} parent=0 // pred_check
    _
  $region31: #{lenet5_forward.5} parent=0 // pred_check_branch
    %576 = sbr.rel (0) target = $region33
  $region32: #{lenet5_forward.5} parent=0 // pred_region
    _
  $region33: #{lenet5_forward.5} parent=0 // pred_fallthru
    _

</llo_original>
